<compile_context>
chip_gen: v7x
topology: tpu7x:2x2x1
jax: 0.10.0
libtpu: 0.0.40
codegen_flags: <defaults>
</compile_context>

<pallas_src>
import functools

import jax
import jax.numpy as jnp
import numpy as np
from jax.experimental import pallas as pl
from jax.experimental.pallas import tpu as pltpu


def _selective_pooling_kernel(x_ref, w_ref, b_ref, ksel_ref, expand_ref, o_ref,
                              *, norm, block_b, seq_len, in_dim):
    # x_ref:      (block_b*T, C+1) bf16  rows = (b, t) flattened; last channel = mask
    # w_ref:      (C+1, HD)        bf16  pointwise-conv weight (mask row is zero)
    # b_ref:      (1, HD)          f32   conv bias
    # ksel_ref:   (HD, H)          f32   block-diag keys: ksel[h*D+d, h] = keys[h, d]
    # expand_ref: (H, HD)          f32   one-hot head expand: expand[h, h*D+d] = 1
    # o_ref:      (block_b, HD)    f32
    T = seq_len
    xa = x_ref[...]                                                     # (B*T, C+1)

    # pointwise conv == one MXU matmul over channels (bf16 in, f32 accumulate)
    q = jnp.dot(xa, w_ref[...],
                preferred_element_type=jnp.float32) + b_ref[...]        # (B*T, HD)

    # mask travels as the last input channel: 1.0 = valid, 0.0 = padded
    valid = xa[:, in_dim:in_dim + 1].astype(jnp.float32)                # (B*T, 1)
    neg = (1.0 - valid) * 1000.0

    # per-head scores: sum_d q[., h*D+d] * keys[h, d] via block-diag key matmul
    scores = jnp.dot(q, ksel_ref[...],
                     preferred_element_type=jnp.float32) * norm - neg   # (B*T, H)

    expand = expand_ref[...]
    # per-element softmax over time + attention pooling; static unroll keeps
    # everything in plain 2-D sublane/lane layouts (no in-kernel relayouts).
    for b in range(block_b):
        s_b = scores[b * T:(b + 1) * T, :]                              # (T, H)
        q_b = q[b * T:(b + 1) * T, :]                                   # (T, HD)
        m = jnp.max(s_b, axis=0, keepdims=True)                         # (1, H)
        e = jnp.exp(s_b - m)                                            # (T, H)
        atten = e / jnp.sum(e, axis=0, keepdims=True)                   # (T, H)
        atten_full = jnp.dot(atten, expand,
                             preferred_element_type=jnp.float32)        # (T, HD)
        o_ref[pl.ds(b, 1), :] = jnp.sum(q_b * atten_full, axis=0,
                                        keepdims=True)                  # (1, HD)


def selective_pooling(x_nct, mask, keys, w_conv, b_conv, *, head_dim, num_heads,
                      block_b=8):
    """x_nct: (N, C, T) float, mask: (N, T) float (1=valid), keys: (H, D),
    w_conv: (H*D, C) pointwise conv weight, b_conv: (H*D,)."""
    N, C, T = x_nct.shape
    H, D = num_heads, head_dim
    HD = H * D
    norm = 1.0 / (D ** 0.5)

    # Blocks of `block_b` batch elements per grid step (multiple of 8 keeps the
    # x / output blocks sublane-aligned); pad N up to a whole number of blocks.
    block_b = max(8, (-(-int(block_b) // 8)) * 8)
    n_pad = (-(-N // block_b)) * block_b
    # TODO(synk): for very large T, add a second ("arbitrary") grid axis over T
    # with an online/flash-style softmax so the (block_b*T, HD) tile stays
    # within VMEM (64 MiB on v7x).

    pad_n = n_pad - N
    x_f32 = x_nct.astype(jnp.float32)
    mask_f32 = mask.astype(jnp.float32)
    if pad_n:
        x_f32 = jnp.pad(x_f32, ((0, pad_n), (0, 0), (0, 0)))
        mask_f32 = jnp.pad(mask_f32, ((0, pad_n), (0, 0)))

    # Append the mask as one extra channel, then NCT -> (N*T, C+1) rows in bf16.
    # (transpose + flatten + cast fuse into a single XLA pass over x)
    x_aug = jnp.concatenate([x_f32, mask_f32[:, None, :]], axis=1)      # (n_pad, C+1, T)
    x_rows = jnp.transpose(x_aug, (0, 2, 1)).reshape(n_pad * T, C + 1)
    x_rows = x_rows.astype(jnp.bfloat16)                                # (n_pad*T, C+1)

    # Conv weight (+ a zero row for the mask channel), transposed for x @ w.
    w_aug = jnp.concatenate(
        [w_conv.astype(jnp.float32), jnp.zeros((HD, 1), jnp.float32)], axis=1)
    w_t = jnp.transpose(w_aug, (1, 0)).astype(jnp.bfloat16)             # (C+1, HD)
    b2 = b_conv.reshape(1, HD).astype(jnp.float32)                      # (1, HD)

    eye = jnp.eye(H, dtype=jnp.float32)
    expand = jnp.repeat(eye, D, axis=1)                                 # (H, HD)
    ksel = (expand * keys.reshape(1, HD).astype(jnp.float32)).T         # (HD, H)

    kernel = functools.partial(_selective_pooling_kernel, norm=norm,
                               block_b=block_b, seq_len=T, in_dim=C)

    out = pl.pallas_call(
        kernel,
        out_shape=jax.ShapeDtypeStruct((n_pad, HD), jnp.float32),
        grid_spec=pltpu.PrefetchScalarGridSpec(
            num_scalar_prefetch=0,
            grid=(n_pad // block_b,),
            in_specs=[
                pl.BlockSpec((block_b * T, C + 1), lambda i: (i, 0)),   # x rows
                pl.BlockSpec((C + 1, HD), lambda i: (0, 0)),            # conv weight
                pl.BlockSpec((1, HD), lambda i: (0, 0)),                # conv bias
                pl.BlockSpec((HD, H), lambda i: (0, 0)),                # block-diag keys
                pl.BlockSpec((H, HD), lambda i: (0, 0)),                # head expand
            ],
            out_specs=pl.BlockSpec((block_b, HD), lambda i: (i, 0)),
        ),
        compiler_params=pltpu.CompilerParams(
            dimension_semantics=("parallel",),      # independent batch blocks
            vmem_limit_bytes=32 * 1024 * 1024),     # plenty for these tiles on v5e/v6e/v7x
    )(x_rows, w_t, b2, ksel, expand)

    return out[:N]


def selective_pooling_ref(x_nct, mask, keys, w_conv, b_conv, *, head_dim, num_heads):
    """Pure-JAX reference mirroring the PyTorch forward pass (f32)."""
    N, C, T = x_nct.shape
    H, D = num_heads, head_dim
    norm = 1.0 / (D ** 0.5)
    q = jnp.einsum("nct,oc->nto", x_nct, w_conv) + b_conv                # (N, T, HD)
    q = q.reshape(N, T, H, D)
    scores = jnp.sum(q * keys[None, None], axis=-1) * norm \
        - (1.0 - mask)[:, :, None] * 1000.0                              # (N, T, H)
    atten = jax.nn.softmax(scores, axis=1)
    head = jnp.sum(q * atten[..., None], axis=1).reshape(N, -1)
    return head


if __name__ == "__main__":
    # Module config: selectivePooling(in_dim=4, head_dim=8, num_heads=4), T=16.
    N, in_dim, T = 16, 4, 16
    head_dim, num_heads = 8, 4
    HD = head_dim * num_heads

    key = jax.random.PRNGKey(0)
    k_x, k_keys, k_w = jax.random.split(key, 3)

    # Input in PyTorch NCT layout.
    x = jax.random.normal(k_x, (N, in_dim, T), dtype=jnp.float32)

    # Variable-length valid prefixes: 1.0 = valid step, 0.0 = padded step.
    lengths = (jnp.arange(N) % T) + 1
    mask = (jnp.arange(T)[None, :] < lengths[:, None]).astype(jnp.float32)

    # Parameters (shapes from __init__):
    #   keys: (num_heads, head_dim), orthonormal rows (nn.init.orthogonal_)
    a = jax.random.normal(k_keys, (head_dim, num_heads), dtype=jnp.float32)
    q_mat, _ = jnp.linalg.qr(a)
    keys = q_mat.T.astype(jnp.float32)                                   # (H, D)
    #   w_q.weight: (HD, in_dim, 1) kaiming_normal_(a=1) -> std = 1/sqrt(in_dim)
    w_conv = jax.random.normal(k_w, (HD, in_dim), dtype=jnp.float32) * (1.0 / np.sqrt(in_dim))
    #   w_q.bias: zeros
    b_conv = jnp.zeros((HD,), dtype=jnp.float32)

    out = selective_pooling(x, mask, keys, w_conv, b_conv,
                            head_dim=head_dim, num_heads=num_heads)
    out = jax.block_until_ready(out)

    # Reference with the same bf16 input quantization the kernel's MXU path
    # applies to x / w_conv; all downstream math is f32 in both.
    x_q = x.astype(jnp.bfloat16).astype(jnp.float32)
    w_q = w_conv.astype(jnp.bfloat16).astype(jnp.float32)
    ref = selective_pooling_ref(x_q, mask, keys, w_q, b_conv,
                                head_dim=head_dim, num_heads=num_heads)
    np.testing.assert_allclose(np.asarray(out), np.asarray(ref),
                               rtol=1e-4, atol=1e-4)

    print("KERNEL_OK")
</pallas_src>

<mosaic_0001>
module attributes {stable_mosaic.version = 11 : i64} {
  func.func @_selective_pooling_kernel(%arg0: i32, %arg1: memref<128x5xbf16, #tpu.memory_space<vmem>>, %arg2: memref<5x32xbf16, #tpu.memory_space<vmem>>, %arg3: memref<1x32xf32, #tpu.memory_space<vmem>>, %arg4: memref<32x4xf32, #tpu.memory_space<vmem>>, %arg5: memref<4x32xf32, #tpu.memory_space<vmem>>, %arg6: memref<8x32xf32, #tpu.memory_space<vmem>>) attributes {dimension_semantics = [#tpu.dimension_semantics<parallel>], iteration_bounds = array<i64: 2>, scalar_prefetch = 0 : i64, scratch_operands = 0 : i64, tpu.core_type = #tpu.core_type<tc>, window_params = [{transform_indices = @transform_0, window_bounds = array<i64: 128, 5>}, {pipeline_mode = #tpu.pipeline_mode<synchronous>, transform_indices = @transform_1, window_bounds = array<i64: 5, 32>}, {pipeline_mode = #tpu.pipeline_mode<synchronous>, transform_indices = @transform_2, window_bounds = array<i64: 1, 32>}, {pipeline_mode = #tpu.pipeline_mode<synchronous>, transform_indices = @transform_3, window_bounds = array<i64: 32, 4>}, {pipeline_mode = #tpu.pipeline_mode<synchronous>, transform_indices = @transform_4, window_bounds = array<i64: 4, 32>}, {transform_indices = @transform_5, window_bounds = array<i64: 8, 32>}]} {
    %c0 = arith.constant 0 : index
    %c0_0 = arith.constant 0 : index
    %0 = vector.load %arg1[%c0, %c0_0] : memref<128x5xbf16, #tpu.memory_space<vmem>>, vector<128x5xbf16>
    %c0_1 = arith.constant 0 : index
    %c0_2 = arith.constant 0 : index
    %1 = vector.load %arg2[%c0_1, %c0_2] : memref<5x32xbf16, #tpu.memory_space<vmem>>, vector<5x32xbf16>
    %cst = arith.constant dense<0.000000e+00> : vector<128x32xf32>
    %2 = tpu.matmul %0, %1, %cst {dimension_numbers = #tpu.dot_dimension_numbers<[1], [0], [0], [1], [0, 0, 1, 1], [], []>} : vector<128x5xbf16>, vector<5x32xbf16>, vector<128x32xf32> -> vector<128x32xf32>
    %c0_3 = arith.constant 0 : index
    %c0_4 = arith.constant 0 : index
    %3 = vector.load %arg3[%c0_3, %c0_4] : memref<1x32xf32, #tpu.memory_space<vmem>>, vector<1x32xf32>
    %4 = vector.broadcast %3 : vector<1x32xf32> to vector<128x32xf32>
    %5 = arith.addf %2, %4 : vector<128x32xf32>
    %6 = vector.extract_strided_slice %0 {offsets = [0, 4], sizes = [128, 1], strides = [1, 1]} : vector<128x5xbf16> to vector<128x1xbf16>
    %7 = arith.extf %6 : vector<128x1xbf16> to vector<128x1xf32>
    %cst_5 = arith.constant 1.000000e+00 : f32
    %8 = vector.broadcast %cst_5 : f32 to vector<128x1xf32>
    %9 = arith.subf %8, %7 : vector<128x1xf32>
    %cst_6 = arith.constant 1.000000e+03 : f32
    %10 = vector.broadcast %cst_6 : f32 to vector<128x1xf32>
    %11 = arith.mulf %9, %10 : vector<128x1xf32>
    %c0_7 = arith.constant 0 : index
    %c0_8 = arith.constant 0 : index
    %12 = vector.load %arg4[%c0_7, %c0_8] : memref<32x4xf32, #tpu.memory_space<vmem>>, vector<32x4xf32>
    %cst_9 = arith.constant dense<0.000000e+00> : vector<128x4xf32>
    %13 = tpu.matmul %5, %12, %cst_9 {dimension_numbers = #tpu.dot_dimension_numbers<[1], [0], [0], [1], [0, 0, 1, 1], [], []>} : vector<128x32xf32>, vector<32x4xf32>, vector<128x4xf32> -> vector<128x4xf32>
    %cst_10 = arith.constant 0.353553385 : f32
    %14 = vector.broadcast %cst_10 : f32 to vector<128x4xf32>
    %15 = arith.mulf %13, %14 : vector<128x4xf32>
    %16 = vector.broadcast %11 : vector<128x1xf32> to vector<128x4xf32>
    %17 = arith.subf %15, %16 : vector<128x4xf32>
    %c0_11 = arith.constant 0 : index
    %c0_12 = arith.constant 0 : index
    %18 = vector.load %arg5[%c0_11, %c0_12] : memref<4x32xf32, #tpu.memory_space<vmem>>, vector<4x32xf32>
    %19 = vector.extract_strided_slice %17 {offsets = [0, 0], sizes = [16, 4], strides = [1, 1]} : vector<128x4xf32> to vector<16x4xf32>
    %20 = vector.extract_strided_slice %5 {offsets = [0, 0], sizes = [16, 32], strides = [1, 1]} : vector<128x32xf32> to vector<16x32xf32>
    %cst_13 = arith.constant dense<0xFF800000> : vector<4xf32>
    %21 = vector.multi_reduction <maximumf>, %19, %cst_13 [0] : vector<16x4xf32> to vector<4xf32>
    %22 = vector.shape_cast %21 : vector<4xf32> to vector<1x4xf32>
    %23 = vector.broadcast %22 : vector<1x4xf32> to vector<16x4xf32>
    %24 = arith.subf %19, %23 : vector<16x4xf32>
    %25 = math.exp %24 : vector<16x4xf32>
    %cst_14 = arith.constant dense<0.000000e+00> : vector<4xf32>
    %26 = vector.multi_reduction <add>, %25, %cst_14 [0] : vector<16x4xf32> to vector<4xf32>
    %27 = vector.shape_cast %26 : vector<4xf32> to vector<1x4xf32>
    %28 = vector.broadcast %27 : vector<1x4xf32> to vector<16x4xf32>
    %29 = arith.divf %25, %28 : vector<16x4xf32>
    %cst_15 = arith.constant dense<0.000000e+00> : vector<16x32xf32>
    %30 = tpu.matmul %29, %18, %cst_15 {dimension_numbers = #tpu.dot_dimension_numbers<[1], [0], [0], [1], [0, 0, 1, 1], [], []>} : vector<16x4xf32>, vector<4x32xf32>, vector<16x32xf32> -> vector<16x32xf32>
    %31 = arith.mulf %20, %30 : vector<16x32xf32>
    %cst_16 = arith.constant dense<0.000000e+00> : vector<32xf32>
    %32 = vector.multi_reduction <add>, %31, %cst_16 [0] : vector<16x32xf32> to vector<32xf32>
    %33 = vector.shape_cast %32 : vector<32xf32> to vector<1x32xf32>
    %c0_17 = arith.constant 0 : index
    %c0_18 = arith.constant 0 : index
    %34 = vector.load %arg6[%c0_17, %c0_18] : memref<8x32xf32, #tpu.memory_space<vmem>>, vector<1x32xf32>
    tpu.vector_store %arg6[%c0_17, %c0_18], %33 {strides = array<i32>} : memref<8x32xf32, #tpu.memory_space<vmem>>, vector<1x32xf32>,
    %35 = vector.extract_strided_slice %17 {offsets = [16, 0], sizes = [16, 4], strides = [1, 1]} : vector<128x4xf32> to vector<16x4xf32>
    %36 = vector.extract_strided_slice %5 {offsets = [16, 0], sizes = [16, 32], strides = [1, 1]} : vector<128x32xf32> to vector<16x32xf32>
    %cst_19 = arith.constant dense<0xFF800000> : vector<4xf32>
    %37 = vector.multi_reduction <maximumf>, %35, %cst_19 [0] : vector<16x4xf32> to vector<4xf32>
    %38 = vector.shape_cast %37 : vector<4xf32> to vector<1x4xf32>
    %39 = vector.broadcast %38 : vector<1x4xf32> to vector<16x4xf32>
    %40 = arith.subf %35, %39 : vector<16x4xf32>
    %41 = math.exp %40 : vector<16x4xf32>
    %cst_20 = arith.constant dense<0.000000e+00> : vector<4xf32>
    %42 = vector.multi_reduction <add>, %41, %cst_20 [0] : vector<16x4xf32> to vector<4xf32>
    %43 = vector.shape_cast %42 : vector<4xf32> to vector<1x4xf32>
    %44 = vector.broadcast %43 : vector<1x4xf32> to vector<16x4xf32>
    %45 = arith.divf %41, %44 : vector<16x4xf32>
    %cst_21 = arith.constant dense<0.000000e+00> : vector<16x32xf32>
    %46 = tpu.matmul %45, %18, %cst_21 {dimension_numbers = #tpu.dot_dimension_numbers<[1], [0], [0], [1], [0, 0, 1, 1], [], []>} : vector<16x4xf32>, vector<4x32xf32>, vector<16x32xf32> -> vector<16x32xf32>
    %47 = arith.mulf %36, %46 : vector<16x32xf32>
    %cst_22 = arith.constant dense<0.000000e+00> : vector<32xf32>
    %48 = vector.multi_reduction <add>, %47, %cst_22 [0] : vector<16x32xf32> to vector<32xf32>
    %49 = vector.shape_cast %48 : vector<32xf32> to vector<1x32xf32>
    %c1 = arith.constant 1 : index
    %c0_23 = arith.constant 0 : index
    %50 = vector.load %arg6[%c1, %c0_23] : memref<8x32xf32, #tpu.memory_space<vmem>>, vector<1x32xf32>
    tpu.vector_store %arg6[%c1, %c0_23], %49 {strides = array<i32>} : memref<8x32xf32, #tpu.memory_space<vmem>>, vector<1x32xf32>,
    %51 = vector.extract_strided_slice %17 {offsets = [32, 0], sizes = [16, 4], strides = [1, 1]} : vector<128x4xf32> to vector<16x4xf32>
    %52 = vector.extract_strided_slice %5 {offsets = [32, 0], sizes = [16, 32], strides = [1, 1]} : vector<128x32xf32> to vector<16x32xf32>
    %cst_24 = arith.constant dense<0xFF800000> : vector<4xf32>
    %53 = vector.multi_reduction <maximumf>, %51, %cst_24 [0] : vector<16x4xf32> to vector<4xf32>
    %54 = vector.shape_cast %53 : vector<4xf32> to vector<1x4xf32>
    %55 = vector.broadcast %54 : vector<1x4xf32> to vector<16x4xf32>
    %56 = arith.subf %51, %55 : vector<16x4xf32>
    %57 = math.exp %56 : vector<16x4xf32>
    %cst_25 = arith.constant dense<0.000000e+00> : vector<4xf32>
    %58 = vector.multi_reduction <add>, %57, %cst_25 [0] : vector<16x4xf32> to vector<4xf32>
    %59 = vector.shape_cast %58 : vector<4xf32> to vector<1x4xf32>
    %60 = vector.broadcast %59 : vector<1x4xf32> to vector<16x4xf32>
    %61 = arith.divf %57, %60 : vector<16x4xf32>
    %cst_26 = arith.constant dense<0.000000e+00> : vector<16x32xf32>
    %62 = tpu.matmul %61, %18, %cst_26 {dimension_numbers = #tpu.dot_dimension_numbers<[1], [0], [0], [1], [0, 0, 1, 1], [], []>} : vector<16x4xf32>, vector<4x32xf32>, vector<16x32xf32> -> vector<16x32xf32>
    %63 = arith.mulf %52, %62 : vector<16x32xf32>
    %cst_27 = arith.constant dense<0.000000e+00> : vector<32xf32>
    %64 = vector.multi_reduction <add>, %63, %cst_27 [0] : vector<16x32xf32> to vector<32xf32>
    %65 = vector.shape_cast %64 : vector<32xf32> to vector<1x32xf32>
    %c2 = arith.constant 2 : index
    %c0_28 = arith.constant 0 : index
    %66 = vector.load %arg6[%c2, %c0_28] : memref<8x32xf32, #tpu.memory_space<vmem>>, vector<1x32xf32>
    tpu.vector_store %arg6[%c2, %c0_28], %65 {strides = array<i32>} : memref<8x32xf32, #tpu.memory_space<vmem>>, vector<1x32xf32>,
    %67 = vector.extract_strided_slice %17 {offsets = [48, 0], sizes = [16, 4], strides = [1, 1]} : vector<128x4xf32> to vector<16x4xf32>
    %68 = vector.extract_strided_slice %5 {offsets = [48, 0], sizes = [16, 32], strides = [1, 1]} : vector<128x32xf32> to vector<16x32xf32>
    %cst_29 = arith.constant dense<0xFF800000> : vector<4xf32>
    %69 = vector.multi_reduction <maximumf>, %67, %cst_29 [0] : vector<16x4xf32> to vector<4xf32>
    %70 = vector.shape_cast %69 : vector<4xf32> to vector<1x4xf32>
    %71 = vector.broadcast %70 : vector<1x4xf32> to vector<16x4xf32>
    %72 = arith.subf %67, %71 : vector<16x4xf32>
    %73 = math.exp %72 : vector<16x4xf32>
    %cst_30 = arith.constant dense<0.000000e+00> : vector<4xf32>
    %74 = vector.multi_reduction <add>, %73, %cst_30 [0] : vector<16x4xf32> to vector<4xf32>
    %75 = vector.shape_cast %74 : vector<4xf32> to vector<1x4xf32>
    %76 = vector.broadcast %75 : vector<1x4xf32> to vector<16x4xf32>
    %77 = arith.divf %73, %76 : vector<16x4xf32>
    %cst_31 = arith.constant dense<0.000000e+00> : vector<16x32xf32>
    %78 = tpu.matmul %77, %18, %cst_31 {dimension_numbers = #tpu.dot_dimension_numbers<[1], [0], [0], [1], [0, 0, 1, 1], [], []>} : vector<16x4xf32>, vector<4x32xf32>, vector<16x32xf32> -> vector<16x32xf32>
    %79 = arith.mulf %68, %78 : vector<16x32xf32>
    %cst_32 = arith.constant dense<0.000000e+00> : vector<32xf32>
    %80 = vector.multi_reduction <add>, %79, %cst_32 [0] : vector<16x32xf32> to vector<32xf32>
    %81 = vector.shape_cast %80 : vector<32xf32> to vector<1x32xf32>
    %c3 = arith.constant 3 : index
    %c0_33 = arith.constant 0 : index
    %82 = vector.load %arg6[%c3, %c0_33] : memref<8x32xf32, #tpu.memory_space<vmem>>, vector<1x32xf32>
    tpu.vector_store %arg6[%c3, %c0_33], %81 {strides = array<i32>} : memref<8x32xf32, #tpu.memory_space<vmem>>, vector<1x32xf32>,
    %83 = vector.extract_strided_slice %17 {offsets = [64, 0], sizes = [16, 4], strides = [1, 1]} : vector<128x4xf32> to vector<16x4xf32>
    %84 = vector.extract_strided_slice %5 {offsets = [64, 0], sizes = [16, 32], strides = [1, 1]} : vector<128x32xf32> to vector<16x32xf32>
    %cst_34 = arith.constant dense<0xFF800000> : vector<4xf32>
    %85 = vector.multi_reduction <maximumf>, %83, %cst_34 [0] : vector<16x4xf32> to vector<4xf32>
    %86 = vector.shape_cast %85 : vector<4xf32> to vector<1x4xf32>
    %87 = vector.broadcast %86 : vector<1x4xf32> to vector<16x4xf32>
    %88 = arith.subf %83, %87 : vector<16x4xf32>
    %89 = math.exp %88 : vector<16x4xf32>
    %cst_35 = arith.constant dense<0.000000e+00> : vector<4xf32>
    %90 = vector.multi_reduction <add>, %89, %cst_35 [0] : vector<16x4xf32> to vector<4xf32>
    %91 = vector.shape_cast %90 : vector<4xf32> to vector<1x4xf32>
    %92 = vector.broadcast %91 : vector<1x4xf32> to vector<16x4xf32>
    %93 = arith.divf %89, %92 : vector<16x4xf32>
    %cst_36 = arith.constant dense<0.000000e+00> : vector<16x32xf32>
    %94 = tpu.matmul %93, %18, %cst_36 {dimension_numbers = #tpu.dot_dimension_numbers<[1], [0], [0], [1], [0, 0, 1, 1], [], []>} : vector<16x4xf32>, vector<4x32xf32>, vector<16x32xf32> -> vector<16x32xf32>
    %95 = arith.mulf %84, %94 : vector<16x32xf32>
    %cst_37 = arith.constant dense<0.000000e+00> : vector<32xf32>
    %96 = vector.multi_reduction <add>, %95, %cst_37 [0] : vector<16x32xf32> to vector<32xf32>
    %97 = vector.shape_cast %96 : vector<32xf32> to vector<1x32xf32>
    %c4 = arith.constant 4 : index
    %c0_38 = arith.constant 0 : index
    %98 = vector.load %arg6[%c4, %c0_38] : memref<8x32xf32, #tpu.memory_space<vmem>>, vector<1x32xf32>
    tpu.vector_store %arg6[%c4, %c0_38], %97 {strides = array<i32>} : memref<8x32xf32, #tpu.memory_space<vmem>>, vector<1x32xf32>,
    %99 = vector.extract_strided_slice %17 {offsets = [80, 0], sizes = [16, 4], strides = [1, 1]} : vector<128x4xf32> to vector<16x4xf32>
    %100 = vector.extract_strided_slice %5 {offsets = [80, 0], sizes = [16, 32], strides = [1, 1]} : vector<128x32xf32> to vector<16x32xf32>
    %cst_39 = arith.constant dense<0xFF800000> : vector<4xf32>
    %101 = vector.multi_reduction <maximumf>, %99, %cst_39 [0] : vector<16x4xf32> to vector<4xf32>
    %102 = vector.shape_cast %101 : vector<4xf32> to vector<1x4xf32>
    %103 = vector.broadcast %102 : vector<1x4xf32> to vector<16x4xf32>
    %104 = arith.subf %99, %103 : vector<16x4xf32>
    %105 = math.exp %104 : vector<16x4xf32>
    %cst_40 = arith.constant dense<0.000000e+00> : vector<4xf32>
    %106 = vector.multi_reduction <add>, %105, %cst_40 [0] : vector<16x4xf32> to vector<4xf32>
    %107 = vector.shape_cast %106 : vector<4xf32> to vector<1x4xf32>
    %108 = vector.broadcast %107 : vector<1x4xf32> to vector<16x4xf32>
    %109 = arith.divf %105, %108 : vector<16x4xf32>
    %cst_41 = arith.constant dense<0.000000e+00> : vector<16x32xf32>
    %110 = tpu.matmul %109, %18, %cst_41 {dimension_numbers = #tpu.dot_dimension_numbers<[1], [0], [0], [1], [0, 0, 1, 1], [], []>} : vector<16x4xf32>, vector<4x32xf32>, vector<16x32xf32> -> vector<16x32xf32>
    %111 = arith.mulf %100, %110 : vector<16x32xf32>
    %cst_42 = arith.constant dense<0.000000e+00> : vector<32xf32>
    %112 = vector.multi_reduction <add>, %111, %cst_42 [0] : vector<16x32xf32> to vector<32xf32>
    %113 = vector.shape_cast %112 : vector<32xf32> to vector<1x32xf32>
    %c5 = arith.constant 5 : index
    %c0_43 = arith.constant 0 : index
    %114 = vector.load %arg6[%c5, %c0_43] : memref<8x32xf32, #tpu.memory_space<vmem>>, vector<1x32xf32>
    tpu.vector_store %arg6[%c5, %c0_43], %113 {strides = array<i32>} : memref<8x32xf32, #tpu.memory_space<vmem>>, vector<1x32xf32>,
    %115 = vector.extract_strided_slice %17 {offsets = [96, 0], sizes = [16, 4], strides = [1, 1]} : vector<128x4xf32> to vector<16x4xf32>
    %116 = vector.extract_strided_slice %5 {offsets = [96, 0], sizes = [16, 32], strides = [1, 1]} : vector<128x32xf32> to vector<16x32xf32>
    %cst_44 = arith.constant dense<0xFF800000> : vector<4xf32>
    %117 = vector.multi_reduction <maximumf>, %115, %cst_44 [0] : vector<16x4xf32> to vector<4xf32>
    %118 = vector.shape_cast %117 : vector<4xf32> to vector<1x4xf32>
    %119 = vector.broadcast %118 : vector<1x4xf32> to vector<16x4xf32>
    %120 = arith.subf %115, %119 : vector<16x4xf32>
    %121 = math.exp %120 : vector<16x4xf32>
    %cst_45 = arith.constant dense<0.000000e+00> : vector<4xf32>
    %122 = vector.multi_reduction <add>, %121, %cst_45 [0] : vector<16x4xf32> to vector<4xf32>
    %123 = vector.shape_cast %122 : vector<4xf32> to vector<1x4xf32>
    %124 = vector.broadcast %123 : vector<1x4xf32> to vector<16x4xf32>
    %125 = arith.divf %121, %124 : vector<16x4xf32>
    %cst_46 = arith.constant dense<0.000000e+00> : vector<16x32xf32>
    %126 = tpu.matmul %125, %18, %cst_46 {dimension_numbers = #tpu.dot_dimension_numbers<[1], [0], [0], [1], [0, 0, 1, 1], [], []>} : vector<16x4xf32>, vector<4x32xf32>, vector<16x32xf32> -> vector<16x32xf32>
    %127 = arith.mulf %116, %126 : vector<16x32xf32>
    %cst_47 = arith.constant dense<0.000000e+00> : vector<32xf32>
    %128 = vector.multi_reduction <add>, %127, %cst_47 [0] : vector<16x32xf32> to vector<32xf32>
    %129 = vector.shape_cast %128 : vector<32xf32> to vector<1x32xf32>
    %c6 = arith.constant 6 : index
    %c0_48 = arith.constant 0 : index
    %130 = vector.load %arg6[%c6, %c0_48] : memref<8x32xf32, #tpu.memory_space<vmem>>, vector<1x32xf32>
    tpu.vector_store %arg6[%c6, %c0_48], %129 {strides = array<i32>} : memref<8x32xf32, #tpu.memory_space<vmem>>, vector<1x32xf32>,
    %131 = vector.extract_strided_slice %17 {offsets = [112, 0], sizes = [16, 4], strides = [1, 1]} : vector<128x4xf32> to vector<16x4xf32>
    %132 = vector.extract_strided_slice %5 {offsets = [112, 0], sizes = [16, 32], strides = [1, 1]} : vector<128x32xf32> to vector<16x32xf32>
    %cst_49 = arith.constant dense<0xFF800000> : vector<4xf32>
    %133 = vector.multi_reduction <maximumf>, %131, %cst_49 [0] : vector<16x4xf32> to vector<4xf32>
    %134 = vector.shape_cast %133 : vector<4xf32> to vector<1x4xf32>
    %135 = vector.broadcast %134 : vector<1x4xf32> to vector<16x4xf32>
    %136 = arith.subf %131, %135 : vector<16x4xf32>
    %137 = math.exp %136 : vector<16x4xf32>
    %cst_50 = arith.constant dense<0.000000e+00> : vector<4xf32>
    %138 = vector.multi_reduction <add>, %137, %cst_50 [0] : vector<16x4xf32> to vector<4xf32>
    %139 = vector.shape_cast %138 : vector<4xf32> to vector<1x4xf32>
    %140 = vector.broadcast %139 : vector<1x4xf32> to vector<16x4xf32>
    %141 = arith.divf %137, %140 : vector<16x4xf32>
    %cst_51 = arith.constant dense<0.000000e+00> : vector<16x32xf32>
    %142 = tpu.matmul %141, %18, %cst_51 {dimension_numbers = #tpu.dot_dimension_numbers<[1], [0], [0], [1], [0, 0, 1, 1], [], []>} : vector<16x4xf32>, vector<4x32xf32>, vector<16x32xf32> -> vector<16x32xf32>
    %143 = arith.mulf %132, %142 : vector<16x32xf32>
    %cst_52 = arith.constant dense<0.000000e+00> : vector<32xf32>
    %144 = vector.multi_reduction <add>, %143, %cst_52 [0] : vector<16x32xf32> to vector<32xf32>
    %145 = vector.shape_cast %144 : vector<32xf32> to vector<1x32xf32>
    %c7 = arith.constant 7 : index
    %c0_53 = arith.constant 0 : index
    %146 = vector.load %arg6[%c7, %c0_53] : memref<8x32xf32, #tpu.memory_space<vmem>>, vector<1x32xf32>
    tpu.vector_store %arg6[%c7, %c0_53], %145 {strides = array<i32>} : memref<8x32xf32, #tpu.memory_space<vmem>>, vector<1x32xf32>,
    return
  }
  func.func @transform_0(%arg0: i32) -> (i32, i32) {
    %c0_i32 = arith.constant 0 : i32
    %c0_i32_0 = arith.constant 0 : i32
    return %arg0, %c0_i32 : i32, i32
  }
  func.func @transform_1(%arg0: i32) -> (i32, i32) {
    %c0_i32 = arith.constant 0 : i32
    %c0_i32_0 = arith.constant 0 : i32
    %c0_i32_1 = arith.constant 0 : i32
    return %c0_i32, %c0_i32_0 : i32, i32
  }
  func.func @transform_2(%arg0: i32) -> (i32, i32) {
    %c0_i32 = arith.constant 0 : i32
    %c0_i32_0 = arith.constant 0 : i32
    %c0_i32_1 = arith.constant 0 : i32
    return %c0_i32, %c0_i32_0 : i32, i32
  }
  func.func @transform_3(%arg0: i32) -> (i32, i32) {
    %c0_i32 = arith.constant 0 : i32
    %c0_i32_0 = arith.constant 0 : i32
    %c0_i32_1 = arith.constant 0 : i32
    return %c0_i32, %c0_i32_0 : i32, i32
  }
  func.func @transform_4(%arg0: i32) -> (i32, i32) {
    %c0_i32 = arith.constant 0 : i32
    %c0_i32_0 = arith.constant 0 : i32
    %c0_i32_1 = arith.constant 0 : i32
    return %c0_i32, %c0_i32_0 : i32, i32
  }
  func.func @transform_5(%arg0: i32) -> (i32, i32) {
    %c0_i32 = arith.constant 0 : i32
    %c0_i32_0 = arith.constant 0 : i32
    return %arg0, %c0_i32 : i32, i32
  }
}

</mosaic_0001>

<llo_original>
// kernel: tpu_custom_call.1
$region0: #{tpu_custom_call.1}
  #allocation0 [shape = 'u32[]', space=smem, size = 0x4, offset = 0x4, fixed_abs, tag = 'smem constant byte address 0x4 - core index']
  #allocation1 [shape = 'u32[144,128]{1,0:T(1,128)}', space=vmem, size = 0x12000, scoped, tag = 'internal scratch']
  %s0 = inlined_call_operand.vmem [shape: bf16[256,5], index: 0, kind: input, shape index: {}]
  %s1 = inlined_call_operand.vmem [shape: bf16[5,32], index: 1, kind: input, shape index: {}]
  %s2 = inlined_call_operand.vmem [shape: f32[1,32], index: 2, kind: input, shape index: {}]
  %s3 = inlined_call_operand.vmem [shape: f32[32,4], index: 3, kind: input, shape index: {}]
  %s4 = inlined_call_operand.vmem [shape: f32[4,32], index: 4, kind: input, shape index: {}]
  %s5 = inlined_call_operand.hbm [shape: f32[16,32], index: 5, kind: output, shape index: {}]
  %s6 = sld [smem:[#allocation0]]
  $region53: #{tpu_custom_call.1} parent=0
    _
  %s8 = ssub.s32 1, %s6
  %s9 = scalar_select 0, %s8, %s6
  $region1: #{tpu_custom_call.1} parent=0
    #allocation2 [shape = 'u8[8192]{0}', space=vmem, size = 0x2000, scoped, tag = 'output window, operand 0']
    #allocation3 [shape = 's32[2]{0}', space=sflag, size = 0x8, scoped, tag = 'scoped memory for tpu_custom_call.1']
    %10 = vsyncpa [#allocation3], 0
    %s11 = scalar_lea.sflag [#allocation3], 1
    %12 = vsyncpa %s11, 0
    loop: start=0, step=1, limit=4
    $region2: #{tpu_custom_call.1} parent=1 // loop_pre_header
      _
    $region3: #{tpu_custom_call.1} parent=1 // loop_header
      %s14 = sphi 0, %s18
      %p15 = scmp.ge.s32.totalorder %s14, 4
      %s24 = sphi 0, %s26
      %s27 = sphi 0, %s24
      %s28 = sphi 0, %s27
      %s44 = sphi 0, %s28
      %s48 = sphi 0, %s48
      %s50 = sphi 0, %s48
      %s51 = sphi 0, %s50
      %s65 = sphi 0, %s51
      %s69 = sphi 0, %s69
      %s71 = sphi 0, %s69
      %s72 = sphi 0, %s71
      %s86 = sphi 0, %s72
      %s90 = sphi 0, %s90
      %s92 = sphi 0, %s90
      %s93 = sphi 0, %s92
      %s107 = sphi 0, %s93
      %s111 = sphi 0, %s111
      %s113 = sphi 0, %s111
      %s114 = sphi 0, %s113
      %s128 = sphi 0, %s114
      %s134 = sphi 0, %s136
      %s137 = sphi 0, %s134
      %s138 = sphi 0, %s137
      %s154 = sphi 0, %s138
    $region4: #{tpu_custom_call.1} parent=1 // loop_header_branch
      %17 = sbr.rel (%p15) target = $region8
    $region5: #{tpu_custom_call.1} parent=1 // loop_body
      %s19 = ssub.s32 %s14, 1
      %s20 = ssub.s32 %s14, 2
      %s21 = sadd.s32 %s14, 1
      %s22 = ssub.s32 %s14, %s21
      %p23 = scmp.eq.s32.totalorder %s22, 0
      %s25 = sadd.s32 %s24, 1
      %s26 = scalar_select %p23, %s24, %s25
      %p29 = pneg %p23
      %p30 = scmp.eq.s32.totalorder %s14, 1
      %p31 = por %p29, %p30
      %p32 = scmp.ne.s32.totalorder %s24, %s27
      %p33 = scmp.eq.s32.totalorder %s14, 0
      %p34 = por %p32, %p33
      %p35 = scmp.ne.s32.totalorder %s24, %s27
      %p36 = scmp.eq.s32.totalorder %s19, 1
      %p37 = por %p35, %p36
      %p38 = scmp.ne.s32.totalorder %s27, %s28
      %p39 = scmp.eq.s32.totalorder %s19, 0
      %p40 = por %p38, %p39
      %p41 = scmp.ne.s32.totalorder %s27, %s28
      %p42 = scmp.eq.s32.totalorder %s20, 1
      %p43 = por %p41, %p42
      %p45 = scmp.ne.s32.totalorder %s28, %s44
      %p46 = scmp.eq.s32.totalorder %s20, 0
      %p47 = por %p45, %p46
      %s49 = sadd.s32 %s48, 1
      %p52 = scmp.eq.s32.totalorder %s14, 1
      %p53 = scmp.ne.s32.totalorder %s48, %s50
      %p54 = scmp.eq.s32.totalorder %s14, 0
      %p55 = por %p53, %p54
      %p56 = scmp.ne.s32.totalorder %s48, %s50
      %p57 = scmp.eq.s32.totalorder %s19, 1
      %p58 = por %p56, %p57
      %p59 = scmp.ne.s32.totalorder %s50, %s51
      %p60 = scmp.eq.s32.totalorder %s19, 0
      %p61 = por %p59, %p60
      %p62 = scmp.ne.s32.totalorder %s50, %s51
      %p63 = scmp.eq.s32.totalorder %s20, 1
      %p64 = por %p62, %p63
      %p66 = scmp.ne.s32.totalorder %s51, %s65
      %p67 = scmp.eq.s32.totalorder %s20, 0
      %p68 = por %p66, %p67
      %s70 = sadd.s32 %s69, 1
      %p73 = scmp.eq.s32.totalorder %s14, 1
      %p74 = scmp.ne.s32.totalorder %s69, %s71
      %p75 = scmp.eq.s32.totalorder %s14, 0
      %p76 = por %p74, %p75
      %p77 = scmp.ne.s32.totalorder %s69, %s71
      %p78 = scmp.eq.s32.totalorder %s19, 1
      %p79 = por %p77, %p78
      %p80 = scmp.ne.s32.totalorder %s71, %s72
      %p81 = scmp.eq.s32.totalorder %s19, 0
      %p82 = por %p80, %p81
      %p83 = scmp.ne.s32.totalorder %s71, %s72
      %p84 = scmp.eq.s32.totalorder %s20, 1
      %p85 = por %p83, %p84
      %p87 = scmp.ne.s32.totalorder %s72, %s86
      %p88 = scmp.eq.s32.totalorder %s20, 0
      %p89 = por %p87, %p88
      %s91 = sadd.s32 %s90, 1
      %p94 = scmp.eq.s32.totalorder %s14, 1
      %p95 = scmp.ne.s32.totalorder %s90, %s92
      %p96 = scmp.eq.s32.totalorder %s14, 0
      %p97 = por %p95, %p96
      %p98 = scmp.ne.s32.totalorder %s90, %s92
      %p99 = scmp.eq.s32.totalorder %s19, 1
      %p100 = por %p98, %p99
      %p101 = scmp.ne.s32.totalorder %s92, %s93
      %p102 = scmp.eq.s32.totalorder %s19, 0
      %p103 = por %p101, %p102
      %p104 = scmp.ne.s32.totalorder %s92, %s93
      %p105 = scmp.eq.s32.totalorder %s20, 1
      %p106 = por %p104, %p105
      %p108 = scmp.ne.s32.totalorder %s93, %s107
      %p109 = scmp.eq.s32.totalorder %s20, 0
      %p110 = por %p108, %p109
      %s112 = sadd.s32 %s111, 1
      %p115 = scmp.eq.s32.totalorder %s14, 1
      %p116 = scmp.ne.s32.totalorder %s111, %s113
      %p117 = scmp.eq.s32.totalorder %s14, 0
      %p118 = por %p116, %p117
      %p119 = scmp.ne.s32.totalorder %s111, %s113
      %p120 = scmp.eq.s32.totalorder %s19, 1
      %p121 = por %p119, %p120
      %p122 = scmp.ne.s32.totalorder %s113, %s114
      %p123 = scmp.eq.s32.totalorder %s19, 0
      %p124 = por %p122, %p123
      %p125 = scmp.ne.s32.totalorder %s113, %s114
      %p126 = scmp.eq.s32.totalorder %s20, 1
      %p127 = por %p125, %p126
      %p129 = scmp.ne.s32.totalorder %s114, %s128
      %p130 = scmp.eq.s32.totalorder %s20, 0
      %p131 = por %p129, %p130
      %s132 = ssub.s32 %s14, %s21
      %p133 = scmp.eq.s32.totalorder %s132, 0
      %s135 = sadd.s32 %s134, 1
      %s136 = scalar_select %p133, %s134, %s135
      %p139 = pneg %p133
      %p140 = scmp.eq.s32.totalorder %s14, 1
      %p141 = por %p139, %p140
      %p142 = scmp.ne.s32.totalorder %s134, %s137
      %p143 = scmp.eq.s32.totalorder %s14, 0
      %p144 = por %p142, %p143
      %p145 = scmp.ne.s32.totalorder %s134, %s137
      %p146 = scmp.eq.s32.totalorder %s19, 1
      %p147 = por %p145, %p146
      %p148 = scmp.ne.s32.totalorder %s137, %s138
      %p149 = scmp.eq.s32.totalorder %s19, 0
      %p150 = por %p148, %p149
      %p151 = scmp.ne.s32.totalorder %s137, %s138
      %p152 = scmp.eq.s32.totalorder %s20, 1
      %p153 = por %p151, %p152
      %p155 = scmp.ne.s32.totalorder %s138, %s154
      %p156 = scmp.eq.s32.totalorder %s20, 0
      %p157 = por %p155, %p156
      %p158 = scmp.le.s32.totalorder 1, %s14
      %p159 = scmp.lt.s32.totalorder %s14, 3
      %p160 = pnand %p158, %p159
      %p161 = pneg %p160
      // Predicated region
      $region9: #{tpu_custom_call.1} parent=5 // pred_check
        _
      $region10: #{tpu_custom_call.1} parent=5 // pred_check_branch
        %163 = sbr.rel (%p160) target = $region12
      $region11: #{tpu_custom_call.1} parent=5 // pred_region
        %s164 = ssub.s32 %s14, 1
        // Predicated region
        $region13: #{tpu_custom_call.1} parent=11 // pred_check
          %p165 = pneg %p61
        $region14: #{tpu_custom_call.1} parent=11 // pred_check_branch
          %167 = sbr.rel (%p165) target = $region16
        $region15: #{tpu_custom_call.1} parent=11 // pred_region
          _
        $region16: #{tpu_custom_call.1} parent=11 // pred_fallthru
          _
        // Predicated region
        $region17: #{tpu_custom_call.1} parent=11 // pred_check
          %p168 = pneg %p82
        $region18: #{tpu_custom_call.1} parent=11 // pred_check_branch
          %170 = sbr.rel (%p168) target = $region20
        $region19: #{tpu_custom_call.1} parent=11 // pred_region
          _
        $region20: #{tpu_custom_call.1} parent=11 // pred_fallthru
          _
        // Predicated region
        $region21: #{tpu_custom_call.1} parent=11 // pred_check
          %p171 = pneg %p103
        $region22: #{tpu_custom_call.1} parent=11 // pred_check_branch
          %173 = sbr.rel (%p171) target = $region24
        $region23: #{tpu_custom_call.1} parent=11 // pred_region
          _
        $region24: #{tpu_custom_call.1} parent=11 // pred_fallthru
          _
        // Predicated region
        $region25: #{tpu_custom_call.1} parent=11 // pred_check
          %p174 = pneg %p124
        $region26: #{tpu_custom_call.1} parent=11 // pred_check_branch
          %176 = sbr.rel (%p174) target = $region28
        $region27: #{tpu_custom_call.1} parent=11 // pred_region
          _
        $region28: #{tpu_custom_call.1} parent=11 // pred_fallthru
          _
      $region12: #{tpu_custom_call.1} parent=5 // pred_fallthru
        _
      %p177 = scmp.lt.s32.totalorder %s14, 2
      // Predicated region
      $region29: #{tpu_custom_call.1} parent=5 // pred_check
        %p178 = pneg %p177
      $region30: #{tpu_custom_call.1} parent=5 // pred_check_branch
        %180 = sbr.rel (%p178) target = $region32
      $region31: #{tpu_custom_call.1} parent=5 // pred_region
        // Predicated region
        $region33: #{tpu_custom_call.1} parent=31 // pred_check
          %p181 = pneg %p34
        $region34: #{tpu_custom_call.1} parent=31 // pred_check_branch
          %183 = sbr.rel (%p181) target = $region36
        $region35: #{tpu_custom_call.1} parent=31 // pred_region
          %s184 = smul.u32 16, %s14
          %p185 = scmp.lt.s32.totalorder %s184, 31
          %s186 = scalar_select %p185, %s184, 31
          %s187 = smul.addr %s186, 4
          %s188 = scalar_lea.vmem %s0, %s187
          %s189 = smul.u32 16, %s14
        $region36: #{tpu_custom_call.1} parent=31 // pred_fallthru
          _
      $region32: #{tpu_custom_call.1} parent=5 // pred_fallthru
        _
      %p190 = scmp.le.s32.totalorder 1, %s14
      %p191 = scmp.lt.s32.totalorder %s14, 3
      %p192 = pnand %p190, %p191
      %p193 = pneg %p192
      // Predicated region
      $region37: #{tpu_custom_call.1} parent=5 // pred_check
        _
      $region38: #{tpu_custom_call.1} parent=5 // pred_check_branch
        %195 = sbr.rel (%p192) target = $region40
      $region39: #{tpu_custom_call.1} parent=5 // pred_region
        %s196 = ssub.s32 %s14, 1
        %s197 = smul.u32 16, %s19
        %p198 = scmp.lt.s32.totalorder %s197, 31
        %s199 = scalar_select %p198, %s197, 31
        %s200 = smul.addr %s199, 4
        %s201 = scalar_lea.vmem %s0, %s200
        %p202 = pneg %p40
        %p203 = pneg %p37
        %p204 = pneg %p61
        %p205 = pneg %p58
        %p206 = pneg %p82
        %p207 = pneg %p79
        %p208 = pneg %p103
        %p209 = pneg %p100
        %p210 = pneg %p124
        %p211 = pneg %p121
        %p212 = pneg %p150
        %p213 = pneg %p147
        %s214 = sand.u32 %s137, 1
        %s215 = scalar_lea.sflag [#allocation3], %s214
        %s216 = sand.u32 %s137, 1
        %s217 = smul.addr %s216, 8
        %s218 = scalar_lea.vmem [#allocation2], %s217
        %s219 = smul.u32 16, %s19
        %p220 = scmp.lt.s32.totalorder %s219, 31
        %s221 = scalar_select %p220, %s219, 31
        %s222 = smul.addr %s221, 4
        %s223 = scalar_lea.vmem %s0, %s222
        %s224 = smul.u32 16, %s19
        %v226 = vld [vmem:[%s223] sm:$0xf]
        %v227 = vld [vmem:[%s223 + $0x4] sm:$0xf]
        %v228 = vld [vmem:[%s223 + $0x8] sm:$0xf]
        %v229 = vld [vmem:[%s223 + $0xc] sm:$0xf]
        %v230 = vld [vmem:[%s223 + $0x10] sm:$0xf]
        %v231 = vld [vmem:[%s223 + $0x14] sm:$0xf]
        %v232 = vld [vmem:[%s223 + $0x18] sm:$0xf]
        %v233 = vld [vmem:[%s223 + $0x1c] sm:$0xf]
        %v234 = vld [vmem:[%s223 + $0x20] sm:$0xf]
        %v235 = vld [vmem:[%s223 + $0x24] sm:$0xf]
        %v236 = vld [vmem:[%s223 + $0x28] sm:$0xf]
        %v237 = vld [vmem:[%s223 + $0x2c] sm:$0xf]
        %v238 = vld [vmem:[%s223 + $0x30] sm:$0xf]
        %v239 = vld [vmem:[%s223 + $0x34] sm:$0xf]
        %v240 = vld [vmem:[%s223 + $0x38] sm:$0xf]
        %v241 = vld [vmem:[%s223 + $0x3c] sm:$0xf]
        %v242 = vld [vmem:[%s1] sm:$0x7]
        %v243 = vld [vmem:[%s2] sm:$0x1]
        %v245 = vlaneseq
        %v246 = vshrl.u32 %v245, 7
        %v247 = vsub.s32 0, %v246
        %v248 = vrot.slane %v243, %v247
        %v266 = vunpack.c.l.b16 %v226
        %v267 = vunpack.c.l.b16 %v227
        %v268 = vunpack.c.l.b16 %v228
        %v269 = vunpack.c.l.b16 %v229
        %v270 = vunpack.c.l.b16 %v230
        %v271 = vunpack.c.l.b16 %v231
        %v272 = vunpack.c.l.b16 %v232
        %v273 = vunpack.c.l.b16 %v233
        %v274 = vunpack.c.l.b16 %v234
        %v275 = vunpack.c.l.b16 %v235
        %v276 = vunpack.c.l.b16 %v236
        %v277 = vunpack.c.l.b16 %v237
        %v278 = vunpack.c.l.b16 %v238
        %v279 = vunpack.c.l.b16 %v239
        %v280 = vunpack.c.l.b16 %v240
        %v281 = vunpack.c.l.b16 %v241
        %v282 = vpack.c.b16 %v267, %v266
        %v283 = vpack.c.b16 %v269, %v268
        %v284 = vpack.c.b16 %v271, %v270
        %v285 = vpack.c.b16 %v273, %v272
        %v286 = vpack.c.b16 %v275, %v274
        %v287 = vpack.c.b16 %v277, %v276
        %v288 = vpack.c.b16 %v279, %v278
        %v289 = vpack.c.b16 %v281, %v280
        %vm290 = vcmask 39936
        %v292 = vsel %vm290, %v282, 0
        %v295 = vsel %vm290, %v283, 0
        %v298 = vsel %vm290, %v284, 0
        %v301 = vsel %vm290, %v285, 0
        %v304 = vsel %vm290, %v286, 0
        %v307 = vsel %vm290, %v287, 0
        %v310 = vsel %vm290, %v288, 0
        %v313 = vsel %vm290, %v289, 0
        %vm315 = vcmask 1041408
        %vm316 = vcmask 1042432
        %v317 = vsel %vm315, 4294967295, 65535
        %v318 = vsel %vm316, %v317, 0
        %v320 = vand.u32 %v242, %v318
        %322 = vmatprep.subr.bf16.mxu0 0
        %323 = vmatpush1.bf16.msra.mxu0 %v320
        %324 = vmatprep.subr.bf16.mxu0 0
        %325 = vmatpush1.bf16.msra.mxu0 0
        %326 = vmatprep.subr.bf16.mxu0 0
        %327 = vmatpush1.bf16.msra.mxu0 0
        %328 = vmatprep.subr.bf16.mxu0 0
        %329 = vmatpush1.bf16.msra.mxu0 0
        %330 = vmatprep.subr.bf16.mxu0 0
        %331 = vmatpush1.bf16.msra.mxu0 0
        %332 = vmatprep.subr.bf16.mxu0 0
        %333 = vmatpush1.bf16.msra.mxu0 0
        %334 = vmatprep.subr.bf16.mxu0 0
        %335 = vmatpush1.bf16.msra.mxu0 0
        %336 = vmatprep.subr.bf16.mxu0 0
        %337 = vmatpush1.bf16.msra.mxu0 0
        %338 = vmatprep.subr.bf16.mxu0 0
        %339 = vmatpush1.bf16.msra.mxu0 0
        %340 = vmatprep.subr.bf16.mxu0 0
        %341 = vmatpush1.bf16.msra.mxu0 0
        %342 = vmatprep.subr.bf16.mxu0 0
        %343 = vmatpush1.bf16.msra.mxu0 0
        %344 = vmatprep.subr.bf16.mxu0 0
        %345 = vmatpush1.bf16.msra.mxu0 0
        %346 = vmatprep.subr.bf16.mxu0 0
        %347 = vmatpush1.bf16.msra.mxu0 0
        %348 = vmatprep.subr.bf16.mxu0 0
        %349 = vmatpush1.bf16.msra.mxu0 0
        %350 = vmatprep.subr.bf16.mxu0 0
        %351 = vmatpush1.bf16.msra.mxu0 0
        %352 = vmatprep.subr.bf16.mxu0 0
        %353 = vmatpush1.bf16.msra.mxu0 0
        %354 = vmatprep.mubr.bf16.mxu0 0
        %355 = vmatmul.mubr.bf16.gmra.mrb[0].mxu0 %v292
        %v356 = vpop.f32.mrb[0].mxu0
        %v357 = vadd.f32 %v248, %v356
        %v358 = vpop.f32.mrb[0].mxu0
        %v359 = vpop.f32.mrb[0].mxu0
        %v360 = vadd.f32 %v248, %v359
        %v361 = vpop.f32.mrb[0].mxu0
        %362 = vmatprep.mubr.bf16.mxu0 0
        %363 = vmatmul.mubr.bf16.gmra.mrb[0].mxu0 %v295
        %v364 = vpop.f32.mrb[0].mxu0
        %v365 = vadd.f32 %v248, %v364
        %v366 = vpop.f32.mrb[0].mxu0
        %v367 = vpop.f32.mrb[0].mxu0
        %v368 = vadd.f32 %v248, %v367
        %v369 = vpop.f32.mrb[0].mxu0
        %370 = vmatprep.mubr.bf16.mxu0 0
        %371 = vmatmul.mubr.bf16.gmra.mrb[0].mxu0 %v298
        %v372 = vpop.f32.mrb[0].mxu0
        %v373 = vadd.f32 %v248, %v372
        %v374 = vpop.f32.mrb[0].mxu0
        %v375 = vpop.f32.mrb[0].mxu0
        %v376 = vadd.f32 %v248, %v375
        %v377 = vpop.f32.mrb[0].mxu0
        %378 = vmatprep.mubr.bf16.mxu0 0
        %379 = vmatmul.mubr.bf16.gmra.mrb[0].mxu0 %v301
        %v380 = vpop.f32.mrb[0].mxu0
        %v381 = vadd.f32 %v248, %v380
        %v382 = vpop.f32.mrb[0].mxu0
        %v383 = vpop.f32.mrb[0].mxu0
        %v384 = vadd.f32 %v248, %v383
        %v385 = vpop.f32.mrb[0].mxu0
        %386 = vmatprep.mubr.bf16.mxu0 0
        %387 = vmatmul.mubr.bf16.gmra.mrb[0].mxu0 %v304
        %v388 = vpop.f32.mrb[0].mxu0
        %v389 = vadd.f32 %v248, %v388
        %v390 = vpop.f32.mrb[0].mxu0
        %v391 = vpop.f32.mrb[0].mxu0
        %v392 = vadd.f32 %v248, %v391
        %v393 = vpop.f32.mrb[0].mxu0
        %394 = vmatprep.mubr.bf16.mxu0 0
        %395 = vmatmul.mubr.bf16.gmra.mrb[0].mxu0 %v307
        %v396 = vpop.f32.mrb[0].mxu0
        %v397 = vadd.f32 %v248, %v396
        %v398 = vpop.f32.mrb[0].mxu0
        %v399 = vpop.f32.mrb[0].mxu0
        %v400 = vadd.f32 %v248, %v399
        %v401 = vpop.f32.mrb[0].mxu0
        %402 = vmatprep.mubr.bf16.mxu0 0
        %403 = vmatmul.mubr.bf16.gmra.mrb[0].mxu0 %v310
        %v404 = vpop.f32.mrb[0].mxu0
        %v405 = vadd.f32 %v248, %v404
        %v406 = vpop.f32.mrb[0].mxu0
        %v407 = vpop.f32.mrb[0].mxu0
        %v408 = vadd.f32 %v248, %v407
        %v409 = vpop.f32.mrb[0].mxu0
        %410 = vmatprep.mubr.bf16.mxu0 0
        %411 = vmatmul.mubr.bf16.gmra.mrb[0].mxu0 %v313
        %v412 = vpop.f32.mrb[0].mxu0
        %v413 = vadd.f32 %v248, %v412
        %v414 = vpop.f32.mrb[0].mxu0
        %v415 = vpop.f32.mrb[0].mxu0
        %v416 = vadd.f32 %v248, %v415
        %v417 = vpop.f32.mrb[0].mxu0
        %418 = vdwg.mxu0
        %v419 = vunpack.c.l.bf16 %v226
        %v420 = vunpack.c.l.bf16 %v227
        %v421 = vunpack.c.l.bf16 %v228
        %v422 = vunpack.c.l.bf16 %v229
        %v423 = vunpack.c.l.bf16 %v230
        %v424 = vunpack.c.l.bf16 %v231
        %v425 = vunpack.c.l.bf16 %v232
        %v426 = vunpack.c.l.bf16 %v233
        %v427 = vunpack.c.l.bf16 %v234
        %v428 = vunpack.c.l.bf16 %v235
        %v429 = vunpack.c.l.bf16 %v236
        %v430 = vunpack.c.l.bf16 %v237
        %v431 = vunpack.c.l.bf16 %v238
        %v432 = vunpack.c.l.bf16 %v239
        %v433 = vunpack.c.l.bf16 %v240
        %v434 = vunpack.c.l.bf16 %v241
        %v435 = vsub.f32 1.0, %v419
        %v436 = vsub.f32 1.0, %v420
        %v437 = vsub.f32 1.0, %v421
        %v438 = vsub.f32 1.0, %v422
        %v439 = vsub.f32 1.0, %v423
        %v440 = vsub.f32 1.0, %v424
        %v441 = vsub.f32 1.0, %v425
        %v442 = vsub.f32 1.0, %v426
        %v443 = vsub.f32 1.0, %v427
        %v444 = vsub.f32 1.0, %v428
        %v445 = vsub.f32 1.0, %v429
        %v446 = vsub.f32 1.0, %v430
        %v447 = vsub.f32 1.0, %v431
        %v448 = vsub.f32 1.0, %v432
        %v449 = vsub.f32 1.0, %v433
        %v450 = vsub.f32 1.0, %v434
        %v451 = vmul.f32 %v435, 1000.0
        %v452 = vmul.f32 %v436, 1000.0
        %v453 = vmul.f32 %v437, 1000.0
        %v454 = vmul.f32 %v438, 1000.0
        %v455 = vmul.f32 %v439, 1000.0
        %v456 = vmul.f32 %v440, 1000.0
        %v457 = vmul.f32 %v441, 1000.0
        %v458 = vmul.f32 %v442, 1000.0
        %v459 = vmul.f32 %v443, 1000.0
        %v460 = vmul.f32 %v444, 1000.0
        %v461 = vmul.f32 %v445, 1000.0
        %v462 = vmul.f32 %v446, 1000.0
        %v463 = vmul.f32 %v447, 1000.0
        %v464 = vmul.f32 %v448, 1000.0
        %v465 = vmul.f32 %v449, 1000.0
        %v466 = vmul.f32 %v450, 1000.0
        %v467 = vld [vmem:[%s3] sm:$0xff]
        %v468 = vld [vmem:[%s3 + $0x8] sm:$0xff]
        %v469 = vld [vmem:[%s3 + $0x10] sm:$0xff]
        %v470 = vld [vmem:[%s3 + $0x18] sm:$0xff]
        %vm471 = vcmask 261120
        %v473 = vsel %vm471, %v357, 0
        %v476 = vsel %vm471, %v360, 0
        %v479 = vsel %vm471, %v365, 0
        %v482 = vsel %vm471, %v368, 0
        %v485 = vsel %vm471, %v373, 0
        %v488 = vsel %vm471, %v376, 0
        %v491 = vsel %vm471, %v381, 0
        %v494 = vsel %vm471, %v384, 0
        %v497 = vsel %vm471, %v389, 0
        %v500 = vsel %vm471, %v392, 0
        %v503 = vsel %vm471, %v397, 0
        %v506 = vsel %vm471, %v400, 0
        %v509 = vsel %vm471, %v405, 0
        %v512 = vsel %vm471, %v408, 0
        %v515 = vsel %vm471, %v413, 0
        %v518 = vsel %vm471, %v416, 0
        %520 = vmatprep.subr.mxu0 0.0
        %521 = vmatpush1.msra.mxu0 %v467
        %522 = vmatprep.subr.mxu0 0.0
        %523 = vmatpush1.msra.mxu0 %v468
        %524 = vmatprep.subr.mxu0 0.0
        %525 = vmatpush1.msra.mxu0 %v469
        %526 = vmatprep.subr.mxu0 0.0
        %527 = vmatpush1.msra.mxu0 %v470
        %528 = vmatprep.subr.mxu0 0.0
        %529 = vmatpush1.msra.mxu0 0.0
        %530 = vmatprep.subr.mxu0 0.0
        %531 = vmatpush1.msra.mxu0 0.0
        %532 = vmatprep.subr.mxu0 0.0
        %533 = vmatpush1.msra.mxu0 0.0
        %534 = vmatprep.subr.mxu0 0.0
        %535 = vmatpush1.msra.mxu0 0.0
        %536 = vmatprep.subr.mxu0 0.0
        %537 = vmatpush1.msra.mxu0 0.0
        %538 = vmatprep.subr.mxu0 0.0
        %539 = vmatpush1.msra.mxu0 0.0
        %540 = vmatprep.subr.mxu0 0.0
        %541 = vmatpush1.msra.mxu0 0.0
        %542 = vmatprep.subr.mxu0 0.0
        %543 = vmatpush1.msra.mxu0 0.0
        %544 = vmatprep.subr.mxu0 0.0
        %545 = vmatpush1.msra.mxu0 0.0
        %546 = vmatprep.subr.mxu0 0.0
        %547 = vmatpush1.msra.mxu0 0.0
        %548 = vmatprep.subr.mxu0 0.0
        %549 = vmatpush1.msra.mxu0 0.0
        %550 = vmatprep.subr.mxu0 0.0
        %551 = vmatpush1.msra.mxu0 0.0
        %552 = vmatprep.subr.mxu0 0.0
        %553 = vmatpush1.msra.mxu0 0.0
        %554 = vmatprep.subr.mxu0 0.0
        %555 = vmatpush1.msra.mxu0 0.0
        %556 = vmatprep.subr.mxu0 0.0
        %557 = vmatpush1.msra.mxu0 0.0
        %558 = vmatprep.subr.mxu0 0.0
        %559 = vmatpush1.msra.mxu0 0.0
        %560 = vmatprep.subr.mxu0 0.0
        %561 = vmatpush1.msra.mxu0 0.0
        %562 = vmatprep.subr.mxu0 0.0
        %563 = vmatpush1.msra.mxu0 0.0
        %564 = vmatprep.subr.mxu0 0.0
        %565 = vmatpush1.msra.mxu0 0.0
        %566 = vmatprep.subr.mxu0 0.0
        %567 = vmatpush1.msra.mxu0 0.0
        %568 = vmatprep.subr.mxu0 0.0
        %569 = vmatpush1.msra.mxu0 0.0
        %570 = vmatprep.subr.mxu0 0.0
        %571 = vmatpush1.msra.mxu0 0.0
        %572 = vmatprep.subr.mxu0 0.0
        %573 = vmatpush1.msra.mxu0 0.0
        %574 = vmatprep.subr.mxu0 0.0
        %575 = vmatpush1.msra.mxu0 0.0
        %576 = vmatprep.subr.mxu0 0.0
        %577 = vmatpush1.msra.mxu0 0.0
        %578 = vmatprep.subr.mxu0 0.0
        %579 = vmatpush1.msra.mxu0 0.0
        %580 = vmatprep.subr.mxu0 0.0
        %581 = vmatpush1.msra.mxu0 0.0
        %582 = vmatprep.subr.mxu0 0.0
        %583 = vmatpush1.msra.mxu0 0.0
        %584 = vmatprep.mubr.f32.mxu0 0.0
        %585 = vmatmul.mubr.f32.gmra.mrb[0].mxu0 %v473
        %v586 = vpop.f32.mrb[0].mxu0
        %v587 = vadd.f32 0.0, %v586
        %v588 = vpop.f32.mrb[0].mxu0
        %589 = vmatprep.mubr.f32.mxu0 0.0
        %590 = vmatmul.mubr.f32.gmra.mrb[0].mxu0 %v476
        %v591 = vpop.f32.mrb[0].mxu0
        %v592 = vadd.f32 0.0, %v591
        %v593 = vpop.f32.mrb[0].mxu0
        %594 = vmatprep.mubr.f32.mxu0 0.0
        %595 = vmatmul.mubr.f32.gmra.mrb[0].mxu0 %v479
        %v596 = vpop.f32.mrb[0].mxu0
        %v597 = vadd.f32 0.0, %v596
        %v598 = vpop.f32.mrb[0].mxu0
        %599 = vmatprep.mubr.f32.mxu0 0.0
        %600 = vmatmul.mubr.f32.gmra.mrb[0].mxu0 %v482
        %v601 = vpop.f32.mrb[0].mxu0
        %v602 = vadd.f32 0.0, %v601
        %v603 = vpop.f32.mrb[0].mxu0
        %604 = vmatprep.mubr.f32.mxu0 0.0
        %605 = vmatmul.mubr.f32.gmra.mrb[0].mxu0 %v485
        %v606 = vpop.f32.mrb[0].mxu0
        %v607 = vadd.f32 0.0, %v606
        %v608 = vpop.f32.mrb[0].mxu0
        %609 = vmatprep.mubr.f32.mxu0 0.0
        %610 = vmatmul.mubr.f32.gmra.mrb[0].mxu0 %v488
        %v611 = vpop.f32.mrb[0].mxu0
        %v612 = vadd.f32 0.0, %v611
        %v613 = vpop.f32.mrb[0].mxu0
        %614 = vmatprep.mubr.f32.mxu0 0.0
        %615 = vmatmul.mubr.f32.gmra.mrb[0].mxu0 %v491
        %v616 = vpop.f32.mrb[0].mxu0
        %v617 = vadd.f32 0.0, %v616
        %v618 = vpop.f32.mrb[0].mxu0
        %619 = vmatprep.mubr.f32.mxu0 0.0
        %620 = vmatmul.mubr.f32.gmra.mrb[0].mxu0 %v494
        %v621 = vpop.f32.mrb[0].mxu0
        %v622 = vadd.f32 0.0, %v621
        %v623 = vpop.f32.mrb[0].mxu0
        %624 = vmatprep.mubr.f32.mxu0 0.0
        %625 = vmatmul.mubr.f32.gmra.mrb[0].mxu0 %v497
        %v626 = vpop.f32.mrb[0].mxu0
        %v627 = vadd.f32 0.0, %v626
        %v628 = vpop.f32.mrb[0].mxu0
        %629 = vmatprep.mubr.f32.mxu0 0.0
        %630 = vmatmul.mubr.f32.gmra.mrb[0].mxu0 %v500
        %v631 = vpop.f32.mrb[0].mxu0
        %v632 = vadd.f32 0.0, %v631
        %v633 = vpop.f32.mrb[0].mxu0
        %634 = vmatprep.mubr.f32.mxu0 0.0
        %635 = vmatmul.mubr.f32.gmra.mrb[0].mxu0 %v503
        %v636 = vpop.f32.mrb[0].mxu0
        %v637 = vadd.f32 0.0, %v636
        %v638 = vpop.f32.mrb[0].mxu0
        %639 = vmatprep.mubr.f32.mxu0 0.0
        %640 = vmatmul.mubr.f32.gmra.mrb[0].mxu0 %v506
        %v641 = vpop.f32.mrb[0].mxu0
        %v642 = vadd.f32 0.0, %v641
        %v643 = vpop.f32.mrb[0].mxu0
        %644 = vmatprep.mubr.f32.mxu0 0.0
        %645 = vmatmul.mubr.f32.gmra.mrb[0].mxu0 %v509
        %v646 = vpop.f32.mrb[0].mxu0
        %v647 = vadd.f32 0.0, %v646
        %v648 = vpop.f32.mrb[0].mxu0
        %649 = vmatprep.mubr.f32.mxu0 0.0
        %650 = vmatmul.mubr.f32.gmra.mrb[0].mxu0 %v512
        %v651 = vpop.f32.mrb[0].mxu0
        %v652 = vadd.f32 0.0, %v651
        %v653 = vpop.f32.mrb[0].mxu0
        %654 = vmatprep.mubr.f32.mxu0 0.0
        %655 = vmatmul.mubr.f32.gmra.mrb[0].mxu0 %v515
        %v656 = vpop.f32.mrb[0].mxu0
        %v657 = vadd.f32 0.0, %v656
        %v658 = vpop.f32.mrb[0].mxu0
        %659 = vmatprep.mubr.f32.mxu0 0.0
        %660 = vmatmul.mubr.f32.gmra.mrb[0].mxu0 %v518
        %v661 = vpop.f32.mrb[0].mxu0
        %v662 = vadd.f32 0.0, %v661
        %v663 = vpop.f32.mrb[0].mxu0
        %664 = vdwg.mxu0
        %v665 = vmul.f32 %v587, 0.35355338
        %v666 = vmul.f32 %v592, 0.35355338
        %v667 = vmul.f32 %v597, 0.35355338
        %v668 = vmul.f32 %v602, 0.35355338
        %v669 = vmul.f32 %v607, 0.35355338
        %v670 = vmul.f32 %v612, 0.35355338
        %v671 = vmul.f32 %v617, 0.35355338
        %v672 = vmul.f32 %v622, 0.35355338
        %v673 = vmul.f32 %v627, 0.35355338
        %v674 = vmul.f32 %v632, 0.35355338
        %v675 = vmul.f32 %v637, 0.35355338
        %v676 = vmul.f32 %v642, 0.35355338
        %v677 = vmul.f32 %v647, 0.35355338
        %v678 = vmul.f32 %v652, 0.35355338
        %v679 = vmul.f32 %v657, 0.35355338
        %v680 = vmul.f32 %v662, 0.35355338
        %682 = vset.pattern.permute.xlu0 4
        %683 = vperm.xlu0 %682, %v451
        %v684 = vpop.permute.xlu0 %683
        %687 = vset.pattern.permute.xlu0 4
        %688 = vperm.xlu0 %687, %v452
        %v689 = vpop.permute.xlu0 %688
        %692 = vset.pattern.permute.xlu0 4
        %693 = vperm.xlu0 %692, %v453
        %v694 = vpop.permute.xlu0 %693
        %697 = vset.pattern.permute.xlu0 4
        %698 = vperm.xlu0 %697, %v454
        %v699 = vpop.permute.xlu0 %698
        %702 = vset.pattern.permute.xlu0 4
        %703 = vperm.xlu0 %702, %v455
        %v704 = vpop.permute.xlu0 %703
        %707 = vset.pattern.permute.xlu0 4
        %708 = vperm.xlu0 %707, %v456
        %v709 = vpop.permute.xlu0 %708
        %712 = vset.pattern.permute.xlu0 4
        %713 = vperm.xlu0 %712, %v457
        %v714 = vpop.permute.xlu0 %713
        %717 = vset.pattern.permute.xlu0 4
        %718 = vperm.xlu0 %717, %v458
        %v719 = vpop.permute.xlu0 %718
        %722 = vset.pattern.permute.xlu0 4
        %723 = vperm.xlu0 %722, %v459
        %v724 = vpop.permute.xlu0 %723
        %727 = vset.pattern.permute.xlu0 4
        %728 = vperm.xlu0 %727, %v460
        %v729 = vpop.permute.xlu0 %728
        %732 = vset.pattern.permute.xlu0 4
        %733 = vperm.xlu0 %732, %v461
        %v734 = vpop.permute.xlu0 %733
        %737 = vset.pattern.permute.xlu0 4
        %738 = vperm.xlu0 %737, %v462
        %v739 = vpop.permute.xlu0 %738
        %742 = vset.pattern.permute.xlu0 4
        %743 = vperm.xlu0 %742, %v463
        %v744 = vpop.permute.xlu0 %743
        %747 = vset.pattern.permute.xlu0 4
        %748 = vperm.xlu0 %747, %v464
        %v749 = vpop.permute.xlu0 %748
        %752 = vset.pattern.permute.xlu0 4
        %753 = vperm.xlu0 %752, %v465
        %v754 = vpop.permute.xlu0 %753
        %757 = vset.pattern.permute.xlu0 4
        %758 = vperm.xlu0 %757, %v466
        %v759 = vpop.permute.xlu0 %758
        %v761 = vsub.f32 %v665, %v684
        %v762 = vsub.f32 %v666, %v689
        %v763 = vsub.f32 %v667, %v694
        %v764 = vsub.f32 %v668, %v699
        %v765 = vsub.f32 %v669, %v704
        %v766 = vsub.f32 %v670, %v709
        %v767 = vsub.f32 %v671, %v714
        %v768 = vsub.f32 %v672, %v719
        %v769 = vsub.f32 %v673, %v724
        %v770 = vsub.f32 %v674, %v729
        %v771 = vsub.f32 %v675, %v734
        %v772 = vsub.f32 %v676, %v739
        %v773 = vsub.f32 %v677, %v744
        %v774 = vsub.f32 %v678, %v749
        %v775 = vsub.f32 %v679, %v754
        %v776 = vsub.f32 %v680, %v759
        %v777 = vld [vmem:[%s4] sm:$0xf]
        %vm778 = vcmask 31744
        %v779 = vsel %vm778, %v761, -inf
        %v780 = vsel %vm778, %v762, -inf
        %v781 = vmax.f32 %v779, %v780
        %v782 = vrot.slane %v781, 4
        %v783 = vmax.f32 %v781, %v782
        %v784 = vrot.slane %v783, 2
        %v785 = vmax.f32 %v783, %v784
        %v786 = vrot.slane %v785, 1
        %v787 = vmax.f32 %v785, %v786
        %v788 = vsub.f32 %v761, %v787
        %v789 = vsub.f32 %v762, %v787
        %v790 = vmul.f32 %v788, 1.442695
        %v791 = vpow.pop %v790
        %v792 = vmul.f32 %v789, 1.442695
        %v793 = vpow.pop %v792
        %v794 = vsel %vm778, %v791, 0.0
        %v795 = vsel %vm778, %v793, 0.0
        %v796 = vadd.f32 %v794, %v795
        %v797 = vrot.slane %v796, 4
        %v798 = vadd.f32 %v796, %v797
        %v799 = vrot.slane %v798, 2
        %v800 = vadd.f32 %v798, %v799
        %v801 = vrot.slane %v800, 1
        %v802 = vadd.f32 %v800, %v801
        %v803 = vrcp.pop %v802
        %v804 = vmul.f32 %v791, %v803
        %v805 = vmul.f32 %v793, %v803
        %v807 = vsel %vm778, %v804, 0
        %v810 = vsel %vm778, %v805, 0
        %vm812 = vcmask 1043456
        %v814 = vsel %vm812, %v777, 0
        %816 = vmatprep.subr.mxu0 0.0
        %817 = vmatpush1.msra.mxu0 %v814
        %818 = vmatprep.subr.mxu0 0.0
        %819 = vmatpush1.msra.mxu0 0.0
        %820 = vmatprep.subr.mxu0 0.0
        %821 = vmatpush1.msra.mxu0 0.0
        %822 = vmatprep.subr.mxu0 0.0
        %823 = vmatpush1.msra.mxu0 0.0
        %824 = vmatprep.subr.mxu0 0.0
        %825 = vmatpush1.msra.mxu0 0.0
        %826 = vmatprep.subr.mxu0 0.0
        %827 = vmatpush1.msra.mxu0 0.0
        %828 = vmatprep.subr.mxu0 0.0
        %829 = vmatpush1.msra.mxu0 0.0
        %830 = vmatprep.subr.mxu0 0.0
        %831 = vmatpush1.msra.mxu0 0.0
        %832 = vmatprep.subr.mxu0 0.0
        %833 = vmatpush1.msra.mxu0 0.0
        %834 = vmatprep.subr.mxu0 0.0
        %835 = vmatpush1.msra.mxu0 0.0
        %836 = vmatprep.subr.mxu0 0.0
        %837 = vmatpush1.msra.mxu0 0.0
        %838 = vmatprep.subr.mxu0 0.0
        %839 = vmatpush1.msra.mxu0 0.0
        %840 = vmatprep.subr.mxu0 0.0
        %841 = vmatpush1.msra.mxu0 0.0
        %842 = vmatprep.subr.mxu0 0.0
        %843 = vmatpush1.msra.mxu0 0.0
        %844 = vmatprep.subr.mxu0 0.0
        %845 = vmatpush1.msra.mxu0 0.0
        %846 = vmatprep.subr.mxu0 0.0
        %847 = vmatpush1.msra.mxu0 0.0
        %848 = vmatprep.subr.mxu0 0.0
        %849 = vmatpush1.msra.mxu0 0.0
        %850 = vmatprep.subr.mxu0 0.0
        %851 = vmatpush1.msra.mxu0 0.0
        %852 = vmatprep.subr.mxu0 0.0
        %853 = vmatpush1.msra.mxu0 0.0
        %854 = vmatprep.subr.mxu0 0.0
        %855 = vmatpush1.msra.mxu0 0.0
        %856 = vmatprep.subr.mxu0 0.0
        %857 = vmatpush1.msra.mxu0 0.0
        %858 = vmatprep.subr.mxu0 0.0
        %859 = vmatpush1.msra.mxu0 0.0
        %860 = vmatprep.subr.mxu0 0.0
        %861 = vmatpush1.msra.mxu0 0.0
        %862 = vmatprep.subr.mxu0 0.0
        %863 = vmatpush1.msra.mxu0 0.0
        %864 = vmatprep.subr.mxu0 0.0
        %865 = vmatpush1.msra.mxu0 0.0
        %866 = vmatprep.subr.mxu0 0.0
        %867 = vmatpush1.msra.mxu0 0.0
        %868 = vmatprep.subr.mxu0 0.0
        %869 = vmatpush1.msra.mxu0 0.0
        %870 = vmatprep.subr.mxu0 0.0
        %871 = vmatpush1.msra.mxu0 0.0
        %872 = vmatprep.subr.mxu0 0.0
        %873 = vmatpush1.msra.mxu0 0.0
        %874 = vmatprep.subr.mxu0 0.0
        %875 = vmatpush1.msra.mxu0 0.0
        %876 = vmatprep.subr.mxu0 0.0
        %877 = vmatpush1.msra.mxu0 0.0
        %878 = vmatprep.subr.mxu0 0.0
        %879 = vmatpush1.msra.mxu0 0.0
        %880 = vmatprep.mubr.f32.mxu0 0.0
        %881 = vmatmul.mubr.f32.gmra.mrb[0].mxu0 %v807
        %v882 = vpop.f32.mrb[0].mxu0
        %v883 = vadd.f32 0.0, %v882
        %v884 = vpop.f32.mrb[0].mxu0
        %885 = vmatprep.mubr.f32.mxu0 0.0
        %886 = vmatmul.mubr.f32.gmra.mrb[0].mxu0 %v810
        %v887 = vpop.f32.mrb[0].mxu0
        %v888 = vadd.f32 0.0, %v887
        %v889 = vpop.f32.mrb[0].mxu0
        %890 = vdwg.mxu0
        %v891 = vmul.f32 %v357, %v883
        %v892 = vmul.f32 %v360, %v888
        %v893 = vsel %vm471, %v891, 0.0
        %v894 = vsel %vm471, %v892, 0.0
        %v895 = vadd.f32 %v893, %v894
        %v896 = vrot.slane %v895, 4
        %v897 = vadd.f32 %v895, %v896
        %v898 = vrot.slane %v897, 2
        %v899 = vadd.f32 %v897, %v898
        %v900 = vrot.slane %v899, 1
        %v901 = vadd.f32 %v899, %v900
        %vm902 = vcmask 253952
        %903 = vst.msk [vmem:[%s218] sm:$0x1] %vm902, %v901
        %v904 = vsel %vm778, %v763, -inf
        %v905 = vsel %vm778, %v764, -inf
        %v906 = vmax.f32 %v904, %v905
        %v907 = vrot.slane %v906, 4
        %v908 = vmax.f32 %v906, %v907
        %v909 = vrot.slane %v908, 2
        %v910 = vmax.f32 %v908, %v909
        %v911 = vrot.slane %v910, 1
        %v912 = vmax.f32 %v910, %v911
        %v913 = vsub.f32 %v763, %v912
        %v914 = vsub.f32 %v764, %v912
        %v915 = vmul.f32 %v913, 1.442695
        %v916 = vpow.pop %v915
        %v917 = vmul.f32 %v914, 1.442695
        %v918 = vpow.pop %v917
        %v919 = vsel %vm778, %v916, 0.0
        %v920 = vsel %vm778, %v918, 0.0
        %v921 = vadd.f32 %v919, %v920
        %v922 = vrot.slane %v921, 4
        %v923 = vadd.f32 %v921, %v922
        %v924 = vrot.slane %v923, 2
        %v925 = vadd.f32 %v923, %v924
        %v926 = vrot.slane %v925, 1
        %v927 = vadd.f32 %v925, %v926
        %v928 = vrcp.pop %v927
        %v929 = vmul.f32 %v916, %v928
        %v930 = vmul.f32 %v918, %v928
        %v932 = vsel %vm778, %v929, 0
        %v935 = vsel %vm778, %v930, 0
        %937 = vmatprep.subr.mxu0 0.0
        %938 = vmatpush1.msra.mxu0 %v814
        %939 = vmatprep.subr.mxu0 0.0
        %940 = vmatpush1.msra.mxu0 0.0
        %941 = vmatprep.subr.mxu0 0.0
        %942 = vmatpush1.msra.mxu0 0.0
        %943 = vmatprep.subr.mxu0 0.0
        %944 = vmatpush1.msra.mxu0 0.0
        %945 = vmatprep.subr.mxu0 0.0
        %946 = vmatpush1.msra.mxu0 0.0
        %947 = vmatprep.subr.mxu0 0.0
        %948 = vmatpush1.msra.mxu0 0.0
        %949 = vmatprep.subr.mxu0 0.0
        %950 = vmatpush1.msra.mxu0 0.0
        %951 = vmatprep.subr.mxu0 0.0
        %952 = vmatpush1.msra.mxu0 0.0
        %953 = vmatprep.subr.mxu0 0.0
        %954 = vmatpush1.msra.mxu0 0.0
        %955 = vmatprep.subr.mxu0 0.0
        %956 = vmatpush1.msra.mxu0 0.0
        %957 = vmatprep.subr.mxu0 0.0
        %958 = vmatpush1.msra.mxu0 0.0
        %959 = vmatprep.subr.mxu0 0.0
        %960 = vmatpush1.msra.mxu0 0.0
        %961 = vmatprep.subr.mxu0 0.0
        %962 = vmatpush1.msra.mxu0 0.0
        %963 = vmatprep.subr.mxu0 0.0
        %964 = vmatpush1.msra.mxu0 0.0
        %965 = vmatprep.subr.mxu0 0.0
        %966 = vmatpush1.msra.mxu0 0.0
        %967 = vmatprep.subr.mxu0 0.0
        %968 = vmatpush1.msra.mxu0 0.0
        %969 = vmatprep.subr.mxu0 0.0
        %970 = vmatpush1.msra.mxu0 0.0
        %971 = vmatprep.subr.mxu0 0.0
        %972 = vmatpush1.msra.mxu0 0.0
        %973 = vmatprep.subr.mxu0 0.0
        %974 = vmatpush1.msra.mxu0 0.0
        %975 = vmatprep.subr.mxu0 0.0
        %976 = vmatpush1.msra.mxu0 0.0
        %977 = vmatprep.subr.mxu0 0.0
        %978 = vmatpush1.msra.mxu0 0.0
        %979 = vmatprep.subr.mxu0 0.0
        %980 = vmatpush1.msra.mxu0 0.0
        %981 = vmatprep.subr.mxu0 0.0
        %982 = vmatpush1.msra.mxu0 0.0
        %983 = vmatprep.subr.mxu0 0.0
        %984 = vmatpush1.msra.mxu0 0.0
        %985 = vmatprep.subr.mxu0 0.0
        %986 = vmatpush1.msra.mxu0 0.0
        %987 = vmatprep.subr.mxu0 0.0
        %988 = vmatpush1.msra.mxu0 0.0
        %989 = vmatprep.subr.mxu0 0.0
        %990 = vmatpush1.msra.mxu0 0.0
        %991 = vmatprep.subr.mxu0 0.0
        %992 = vmatpush1.msra.mxu0 0.0
        %993 = vmatprep.subr.mxu0 0.0
        %994 = vmatpush1.msra.mxu0 0.0
        %995 = vmatprep.subr.mxu0 0.0
        %996 = vmatpush1.msra.mxu0 0.0
        %997 = vmatprep.subr.mxu0 0.0
        %998 = vmatpush1.msra.mxu0 0.0
        %999 = vmatprep.subr.mxu0 0.0
        %1000 = vmatpush1.msra.mxu0 0.0
        %1001 = vmatprep.mubr.f32.mxu0 0.0
        %1002 = vmatmul.mubr.f32.gmra.mrb[0].mxu0 %v932
        %v1003 = vpop.f32.mrb[0].mxu0
        %v1004 = vadd.f32 0.0, %v1003
        %v1005 = vpop.f32.mrb[0].mxu0
        %1006 = vmatprep.mubr.f32.mxu0 0.0
        %1007 = vmatmul.mubr.f32.gmra.mrb[0].mxu0 %v935
        %v1008 = vpop.f32.mrb[0].mxu0
        %v1009 = vadd.f32 0.0, %v1008
        %v1010 = vpop.f32.mrb[0].mxu0
        %1011 = vdwg.mxu0
        %v1012 = vmul.f32 %v365, %v1004
        %v1013 = vmul.f32 %v368, %v1009
        %v1014 = vsel %vm471, %v1012, 0.0
        %v1015 = vsel %vm471, %v1013, 0.0
        %v1016 = vadd.f32 %v1014, %v1015
        %v1017 = vrot.slane %v1016, 4
        %v1018 = vadd.f32 %v1016, %v1017
        %v1019 = vrot.slane %v1018, 2
        %v1020 = vadd.f32 %v1018, %v1019
        %v1021 = vrot.slane %v1020, 1
        %v1022 = vadd.f32 %v1020, %v1021
        %1023 = vst.msk [vmem:[%s218 + $0x1] sm:$0x1] %vm902, %v1022
        %v1024 = vsel %vm778, %v765, -inf
        %v1025 = vsel %vm778, %v766, -inf
        %v1026 = vmax.f32 %v1024, %v1025
        %v1027 = vrot.slane %v1026, 4
        %v1028 = vmax.f32 %v1026, %v1027
        %v1029 = vrot.slane %v1028, 2
        %v1030 = vmax.f32 %v1028, %v1029
        %v1031 = vrot.slane %v1030, 1
        %v1032 = vmax.f32 %v1030, %v1031
        %v1033 = vsub.f32 %v765, %v1032
        %v1034 = vsub.f32 %v766, %v1032
        %v1035 = vmul.f32 %v1033, 1.442695
        %v1036 = vpow.pop %v1035
        %v1037 = vmul.f32 %v1034, 1.442695
        %v1038 = vpow.pop %v1037
        %v1039 = vsel %vm778, %v1036, 0.0
        %v1040 = vsel %vm778, %v1038, 0.0
        %v1041 = vadd.f32 %v1039, %v1040
        %v1042 = vrot.slane %v1041, 4
        %v1043 = vadd.f32 %v1041, %v1042
        %v1044 = vrot.slane %v1043, 2
        %v1045 = vadd.f32 %v1043, %v1044
        %v1046 = vrot.slane %v1045, 1
        %v1047 = vadd.f32 %v1045, %v1046
        %v1048 = vrcp.pop %v1047
        %v1049 = vmul.f32 %v1036, %v1048
        %v1050 = vmul.f32 %v1038, %v1048
        %v1052 = vsel %vm778, %v1049, 0
        %v1055 = vsel %vm778, %v1050, 0
        %1057 = vmatprep.subr.mxu0 0.0
        %1058 = vmatpush1.msra.mxu0 %v814
        %1059 = vmatprep.subr.mxu0 0.0
        %1060 = vmatpush1.msra.mxu0 0.0
        %1061 = vmatprep.subr.mxu0 0.0
        %1062 = vmatpush1.msra.mxu0 0.0
        %1063 = vmatprep.subr.mxu0 0.0
        %1064 = vmatpush1.msra.mxu0 0.0
        %1065 = vmatprep.subr.mxu0 0.0
        %1066 = vmatpush1.msra.mxu0 0.0
        %1067 = vmatprep.subr.mxu0 0.0
        %1068 = vmatpush1.msra.mxu0 0.0
        %1069 = vmatprep.subr.mxu0 0.0
        %1070 = vmatpush1.msra.mxu0 0.0
        %1071 = vmatprep.subr.mxu0 0.0
        %1072 = vmatpush1.msra.mxu0 0.0
        %1073 = vmatprep.subr.mxu0 0.0
        %1074 = vmatpush1.msra.mxu0 0.0
        %1075 = vmatprep.subr.mxu0 0.0
        %1076 = vmatpush1.msra.mxu0 0.0
        %1077 = vmatprep.subr.mxu0 0.0
        %1078 = vmatpush1.msra.mxu0 0.0
        %1079 = vmatprep.subr.mxu0 0.0
        %1080 = vmatpush1.msra.mxu0 0.0
        %1081 = vmatprep.subr.mxu0 0.0
        %1082 = vmatpush1.msra.mxu0 0.0
        %1083 = vmatprep.subr.mxu0 0.0
        %1084 = vmatpush1.msra.mxu0 0.0
        %1085 = vmatprep.subr.mxu0 0.0
        %1086 = vmatpush1.msra.mxu0 0.0
        %1087 = vmatprep.subr.mxu0 0.0
        %1088 = vmatpush1.msra.mxu0 0.0
        %1089 = vmatprep.subr.mxu0 0.0
        %1090 = vmatpush1.msra.mxu0 0.0
        %1091 = vmatprep.subr.mxu0 0.0
        %1092 = vmatpush1.msra.mxu0 0.0
        %1093 = vmatprep.subr.mxu0 0.0
        %1094 = vmatpush1.msra.mxu0 0.0
        %1095 = vmatprep.subr.mxu0 0.0
        %1096 = vmatpush1.msra.mxu0 0.0
        %1097 = vmatprep.subr.mxu0 0.0
        %1098 = vmatpush1.msra.mxu0 0.0
        %1099 = vmatprep.subr.mxu0 0.0
        %1100 = vmatpush1.msra.mxu0 0.0
        %1101 = vmatprep.subr.mxu0 0.0
        %1102 = vmatpush1.msra.mxu0 0.0
        %1103 = vmatprep.subr.mxu0 0.0
        %1104 = vmatpush1.msra.mxu0 0.0
        %1105 = vmatprep.subr.mxu0 0.0
        %1106 = vmatpush1.msra.mxu0 0.0
        %1107 = vmatprep.subr.mxu0 0.0
        %1108 = vmatpush1.msra.mxu0 0.0
        %1109 = vmatprep.subr.mxu0 0.0
        %1110 = vmatpush1.msra.mxu0 0.0
        %1111 = vmatprep.subr.mxu0 0.0
        %1112 = vmatpush1.msra.mxu0 0.0
        %1113 = vmatprep.subr.mxu0 0.0
        %1114 = vmatpush1.msra.mxu0 0.0
        %1115 = vmatprep.subr.mxu0 0.0
        %1116 = vmatpush1.msra.mxu0 0.0
        %1117 = vmatprep.subr.mxu0 0.0
        %1118 = vmatpush1.msra.mxu0 0.0
        %1119 = vmatprep.subr.mxu0 0.0
        %1120 = vmatpush1.msra.mxu0 0.0
        %1121 = vmatprep.mubr.f32.mxu0 0.0
        %1122 = vmatmul.mubr.f32.gmra.mrb[0].mxu0 %v1052
        %v1123 = vpop.f32.mrb[0].mxu0
        %v1124 = vadd.f32 0.0, %v1123
        %v1125 = vpop.f32.mrb[0].mxu0
        %1126 = vmatprep.mubr.f32.mxu0 0.0
        %1127 = vmatmul.mubr.f32.gmra.mrb[0].mxu0 %v1055
        %v1128 = vpop.f32.mrb[0].mxu0
        %v1129 = vadd.f32 0.0, %v1128
        %v1130 = vpop.f32.mrb[0].mxu0
        %1131 = vdwg.mxu0
        %v1132 = vmul.f32 %v373, %v1124
        %v1133 = vmul.f32 %v376, %v1129
        %v1134 = vsel %vm471, %v1132, 0.0
        %v1135 = vsel %vm471, %v1133, 0.0
        %v1136 = vadd.f32 %v1134, %v1135
        %v1137 = vrot.slane %v1136, 4
        %v1138 = vadd.f32 %v1136, %v1137
        %v1139 = vrot.slane %v1138, 2
        %v1140 = vadd.f32 %v1138, %v1139
        %v1141 = vrot.slane %v1140, 1
        %v1142 = vadd.f32 %v1140, %v1141
        %1143 = vst.msk [vmem:[%s218 + $0x2] sm:$0x1] %vm902, %v1142
        %v1144 = vsel %vm778, %v767, -inf
        %v1145 = vsel %vm778, %v768, -inf
        %v1146 = vmax.f32 %v1144, %v1145
        %v1147 = vrot.slane %v1146, 4
        %v1148 = vmax.f32 %v1146, %v1147
        %v1149 = vrot.slane %v1148, 2
        %v1150 = vmax.f32 %v1148, %v1149
        %v1151 = vrot.slane %v1150, 1
        %v1152 = vmax.f32 %v1150, %v1151
        %v1153 = vsub.f32 %v767, %v1152
        %v1154 = vsub.f32 %v768, %v1152
        %v1155 = vmul.f32 %v1153, 1.442695
        %v1156 = vpow.pop %v1155
        %v1157 = vmul.f32 %v1154, 1.442695
        %v1158 = vpow.pop %v1157
        %v1159 = vsel %vm778, %v1156, 0.0
        %v1160 = vsel %vm778, %v1158, 0.0
        %v1161 = vadd.f32 %v1159, %v1160
        %v1162 = vrot.slane %v1161, 4
        %v1163 = vadd.f32 %v1161, %v1162
        %v1164 = vrot.slane %v1163, 2
        %v1165 = vadd.f32 %v1163, %v1164
        %v1166 = vrot.slane %v1165, 1
        %v1167 = vadd.f32 %v1165, %v1166
        %v1168 = vrcp.pop %v1167
        %v1169 = vmul.f32 %v1156, %v1168
        %v1170 = vmul.f32 %v1158, %v1168
        %v1172 = vsel %vm778, %v1169, 0
        %v1175 = vsel %vm778, %v1170, 0
        %1177 = vmatprep.subr.mxu0 0.0
        %1178 = vmatpush1.msra.mxu0 %v814
        %1179 = vmatprep.subr.mxu0 0.0
        %1180 = vmatpush1.msra.mxu0 0.0
        %1181 = vmatprep.subr.mxu0 0.0
        %1182 = vmatpush1.msra.mxu0 0.0
        %1183 = vmatprep.subr.mxu0 0.0
        %1184 = vmatpush1.msra.mxu0 0.0
        %1185 = vmatprep.subr.mxu0 0.0
        %1186 = vmatpush1.msra.mxu0 0.0
        %1187 = vmatprep.subr.mxu0 0.0
        %1188 = vmatpush1.msra.mxu0 0.0
        %1189 = vmatprep.subr.mxu0 0.0
        %1190 = vmatpush1.msra.mxu0 0.0
        %1191 = vmatprep.subr.mxu0 0.0
        %1192 = vmatpush1.msra.mxu0 0.0
        %1193 = vmatprep.subr.mxu0 0.0
        %1194 = vmatpush1.msra.mxu0 0.0
        %1195 = vmatprep.subr.mxu0 0.0
        %1196 = vmatpush1.msra.mxu0 0.0
        %1197 = vmatprep.subr.mxu0 0.0
        %1198 = vmatpush1.msra.mxu0 0.0
        %1199 = vmatprep.subr.mxu0 0.0
        %1200 = vmatpush1.msra.mxu0 0.0
        %1201 = vmatprep.subr.mxu0 0.0
        %1202 = vmatpush1.msra.mxu0 0.0
        %1203 = vmatprep.subr.mxu0 0.0
        %1204 = vmatpush1.msra.mxu0 0.0
        %1205 = vmatprep.subr.mxu0 0.0
        %1206 = vmatpush1.msra.mxu0 0.0
        %1207 = vmatprep.subr.mxu0 0.0
        %1208 = vmatpush1.msra.mxu0 0.0
        %1209 = vmatprep.subr.mxu0 0.0
        %1210 = vmatpush1.msra.mxu0 0.0
        %1211 = vmatprep.subr.mxu0 0.0
        %1212 = vmatpush1.msra.mxu0 0.0
        %1213 = vmatprep.subr.mxu0 0.0
        %1214 = vmatpush1.msra.mxu0 0.0
        %1215 = vmatprep.subr.mxu0 0.0
        %1216 = vmatpush1.msra.mxu0 0.0
        %1217 = vmatprep.subr.mxu0 0.0
        %1218 = vmatpush1.msra.mxu0 0.0
        %1219 = vmatprep.subr.mxu0 0.0
        %1220 = vmatpush1.msra.mxu0 0.0
        %1221 = vmatprep.subr.mxu0 0.0
        %1222 = vmatpush1.msra.mxu0 0.0
        %1223 = vmatprep.subr.mxu0 0.0
        %1224 = vmatpush1.msra.mxu0 0.0
        %1225 = vmatprep.subr.mxu0 0.0
        %1226 = vmatpush1.msra.mxu0 0.0
        %1227 = vmatprep.subr.mxu0 0.0
        %1228 = vmatpush1.msra.mxu0 0.0
        %1229 = vmatprep.subr.mxu0 0.0
        %1230 = vmatpush1.msra.mxu0 0.0
        %1231 = vmatprep.subr.mxu0 0.0
        %1232 = vmatpush1.msra.mxu0 0.0
        %1233 = vmatprep.subr.mxu0 0.0
        %1234 = vmatpush1.msra.mxu0 0.0
        %1235 = vmatprep.subr.mxu0 0.0
        %1236 = vmatpush1.msra.mxu0 0.0
        %1237 = vmatprep.subr.mxu0 0.0
        %1238 = vmatpush1.msra.mxu0 0.0
        %1239 = vmatprep.subr.mxu0 0.0
        %1240 = vmatpush1.msra.mxu0 0.0
        %1241 = vmatprep.mubr.f32.mxu0 0.0
        %1242 = vmatmul.mubr.f32.gmra.mrb[0].mxu0 %v1172
        %v1243 = vpop.f32.mrb[0].mxu0
        %v1244 = vadd.f32 0.0, %v1243
        %v1245 = vpop.f32.mrb[0].mxu0
        %1246 = vmatprep.mubr.f32.mxu0 0.0
        %1247 = vmatmul.mubr.f32.gmra.mrb[0].mxu0 %v1175
        %v1248 = vpop.f32.mrb[0].mxu0
        %v1249 = vadd.f32 0.0, %v1248
        %v1250 = vpop.f32.mrb[0].mxu0
        %1251 = vdwg.mxu0
        %v1252 = vmul.f32 %v381, %v1244
        %v1253 = vmul.f32 %v384, %v1249
        %v1254 = vsel %vm471, %v1252, 0.0
        %v1255 = vsel %vm471, %v1253, 0.0
        %v1256 = vadd.f32 %v1254, %v1255
        %v1257 = vrot.slane %v1256, 4
        %v1258 = vadd.f32 %v1256, %v1257
        %v1259 = vrot.slane %v1258, 2
        %v1260 = vadd.f32 %v1258, %v1259
        %v1261 = vrot.slane %v1260, 1
        %v1262 = vadd.f32 %v1260, %v1261
        %1263 = vst.msk [vmem:[%s218 + $0x3] sm:$0x1] %vm902, %v1262
        %v1264 = vsel %vm778, %v769, -inf
        %v1265 = vsel %vm778, %v770, -inf
        %v1266 = vmax.f32 %v1264, %v1265
        %v1267 = vrot.slane %v1266, 4
        %v1268 = vmax.f32 %v1266, %v1267
        %v1269 = vrot.slane %v1268, 2
        %v1270 = vmax.f32 %v1268, %v1269
        %v1271 = vrot.slane %v1270, 1
        %v1272 = vmax.f32 %v1270, %v1271
        %v1273 = vsub.f32 %v769, %v1272
        %v1274 = vsub.f32 %v770, %v1272
        %v1275 = vmul.f32 %v1273, 1.442695
        %v1276 = vpow.pop %v1275
        %v1277 = vmul.f32 %v1274, 1.442695
        %v1278 = vpow.pop %v1277
        %v1279 = vsel %vm778, %v1276, 0.0
        %v1280 = vsel %vm778, %v1278, 0.0
        %v1281 = vadd.f32 %v1279, %v1280
        %v1282 = vrot.slane %v1281, 4
        %v1283 = vadd.f32 %v1281, %v1282
        %v1284 = vrot.slane %v1283, 2
        %v1285 = vadd.f32 %v1283, %v1284
        %v1286 = vrot.slane %v1285, 1
        %v1287 = vadd.f32 %v1285, %v1286
        %v1288 = vrcp.pop %v1287
        %v1289 = vmul.f32 %v1276, %v1288
        %v1290 = vmul.f32 %v1278, %v1288
        %v1292 = vsel %vm778, %v1289, 0
        %v1295 = vsel %vm778, %v1290, 0
        %1297 = vmatprep.subr.mxu0 0.0
        %1298 = vmatpush1.msra.mxu0 %v814
        %1299 = vmatprep.subr.mxu0 0.0
        %1300 = vmatpush1.msra.mxu0 0.0
        %1301 = vmatprep.subr.mxu0 0.0
        %1302 = vmatpush1.msra.mxu0 0.0
        %1303 = vmatprep.subr.mxu0 0.0
        %1304 = vmatpush1.msra.mxu0 0.0
        %1305 = vmatprep.subr.mxu0 0.0
        %1306 = vmatpush1.msra.mxu0 0.0
        %1307 = vmatprep.subr.mxu0 0.0
        %1308 = vmatpush1.msra.mxu0 0.0
        %1309 = vmatprep.subr.mxu0 0.0
        %1310 = vmatpush1.msra.mxu0 0.0
        %1311 = vmatprep.subr.mxu0 0.0
        %1312 = vmatpush1.msra.mxu0 0.0
        %1313 = vmatprep.subr.mxu0 0.0
        %1314 = vmatpush1.msra.mxu0 0.0
        %1315 = vmatprep.subr.mxu0 0.0
        %1316 = vmatpush1.msra.mxu0 0.0
        %1317 = vmatprep.subr.mxu0 0.0
        %1318 = vmatpush1.msra.mxu0 0.0
        %1319 = vmatprep.subr.mxu0 0.0
        %1320 = vmatpush1.msra.mxu0 0.0
        %1321 = vmatprep.subr.mxu0 0.0
        %1322 = vmatpush1.msra.mxu0 0.0
        %1323 = vmatprep.subr.mxu0 0.0
        %1324 = vmatpush1.msra.mxu0 0.0
        %1325 = vmatprep.subr.mxu0 0.0
        %1326 = vmatpush1.msra.mxu0 0.0
        %1327 = vmatprep.subr.mxu0 0.0
        %1328 = vmatpush1.msra.mxu0 0.0
        %1329 = vmatprep.subr.mxu0 0.0
        %1330 = vmatpush1.msra.mxu0 0.0
        %1331 = vmatprep.subr.mxu0 0.0
        %1332 = vmatpush1.msra.mxu0 0.0
        %1333 = vmatprep.subr.mxu0 0.0
        %1334 = vmatpush1.msra.mxu0 0.0
        %1335 = vmatprep.subr.mxu0 0.0
        %1336 = vmatpush1.msra.mxu0 0.0
        %1337 = vmatprep.subr.mxu0 0.0
        %1338 = vmatpush1.msra.mxu0 0.0
        %1339 = vmatprep.subr.mxu0 0.0
        %1340 = vmatpush1.msra.mxu0 0.0
        %1341 = vmatprep.subr.mxu0 0.0
        %1342 = vmatpush1.msra.mxu0 0.0
        %1343 = vmatprep.subr.mxu0 0.0
        %1344 = vmatpush1.msra.mxu0 0.0
        %1345 = vmatprep.subr.mxu0 0.0
        %1346 = vmatpush1.msra.mxu0 0.0
        %1347 = vmatprep.subr.mxu0 0.0
        %1348 = vmatpush1.msra.mxu0 0.0
        %1349 = vmatprep.subr.mxu0 0.0
        %1350 = vmatpush1.msra.mxu0 0.0
        %1351 = vmatprep.subr.mxu0 0.0
        %1352 = vmatpush1.msra.mxu0 0.0
        %1353 = vmatprep.subr.mxu0 0.0
        %1354 = vmatpush1.msra.mxu0 0.0
        %1355 = vmatprep.subr.mxu0 0.0
        %1356 = vmatpush1.msra.mxu0 0.0
        %1357 = vmatprep.subr.mxu0 0.0
        %1358 = vmatpush1.msra.mxu0 0.0
        %1359 = vmatprep.subr.mxu0 0.0
        %1360 = vmatpush1.msra.mxu0 0.0
        %1361 = vmatprep.mubr.f32.mxu0 0.0
        %1362 = vmatmul.mubr.f32.gmra.mrb[0].mxu0 %v1292
        %v1363 = vpop.f32.mrb[0].mxu0
        %v1364 = vadd.f32 0.0, %v1363
        %v1365 = vpop.f32.mrb[0].mxu0
        %1366 = vmatprep.mubr.f32.mxu0 0.0
        %1367 = vmatmul.mubr.f32.gmra.mrb[0].mxu0 %v1295
        %v1368 = vpop.f32.mrb[0].mxu0
        %v1369 = vadd.f32 0.0, %v1368
        %v1370 = vpop.f32.mrb[0].mxu0
        %1371 = vdwg.mxu0
        %v1372 = vmul.f32 %v389, %v1364
        %v1373 = vmul.f32 %v392, %v1369
        %v1374 = vsel %vm471, %v1372, 0.0
        %v1375 = vsel %vm471, %v1373, 0.0
        %v1376 = vadd.f32 %v1374, %v1375
        %v1377 = vrot.slane %v1376, 4
        %v1378 = vadd.f32 %v1376, %v1377
        %v1379 = vrot.slane %v1378, 2
        %v1380 = vadd.f32 %v1378, %v1379
        %v1381 = vrot.slane %v1380, 1
        %v1382 = vadd.f32 %v1380, %v1381
        %1383 = vst.msk [vmem:[%s218 + $0x4] sm:$0x1] %vm902, %v1382
        %v1384 = vsel %vm778, %v771, -inf
        %v1385 = vsel %vm778, %v772, -inf
        %v1386 = vmax.f32 %v1384, %v1385
        %v1387 = vrot.slane %v1386, 4
        %v1388 = vmax.f32 %v1386, %v1387
        %v1389 = vrot.slane %v1388, 2
        %v1390 = vmax.f32 %v1388, %v1389
        %v1391 = vrot.slane %v1390, 1
        %v1392 = vmax.f32 %v1390, %v1391
        %v1393 = vsub.f32 %v771, %v1392
        %v1394 = vsub.f32 %v772, %v1392
        %v1395 = vmul.f32 %v1393, 1.442695
        %v1396 = vpow.pop %v1395
        %v1397 = vmul.f32 %v1394, 1.442695
        %v1398 = vpow.pop %v1397
        %v1399 = vsel %vm778, %v1396, 0.0
        %v1400 = vsel %vm778, %v1398, 0.0
        %v1401 = vadd.f32 %v1399, %v1400
        %v1402 = vrot.slane %v1401, 4
        %v1403 = vadd.f32 %v1401, %v1402
        %v1404 = vrot.slane %v1403, 2
        %v1405 = vadd.f32 %v1403, %v1404
        %v1406 = vrot.slane %v1405, 1
        %v1407 = vadd.f32 %v1405, %v1406
        %v1408 = vrcp.pop %v1407
        %v1409 = vmul.f32 %v1396, %v1408
        %v1410 = vmul.f32 %v1398, %v1408
        %v1412 = vsel %vm778, %v1409, 0
        %v1415 = vsel %vm778, %v1410, 0
        %1417 = vmatprep.subr.mxu0 0.0
        %1418 = vmatpush1.msra.mxu0 %v814
        %1419 = vmatprep.subr.mxu0 0.0
        %1420 = vmatpush1.msra.mxu0 0.0
        %1421 = vmatprep.subr.mxu0 0.0
        %1422 = vmatpush1.msra.mxu0 0.0
        %1423 = vmatprep.subr.mxu0 0.0
        %1424 = vmatpush1.msra.mxu0 0.0
        %1425 = vmatprep.subr.mxu0 0.0
        %1426 = vmatpush1.msra.mxu0 0.0
        %1427 = vmatprep.subr.mxu0 0.0
        %1428 = vmatpush1.msra.mxu0 0.0
        %1429 = vmatprep.subr.mxu0 0.0
        %1430 = vmatpush1.msra.mxu0 0.0
        %1431 = vmatprep.subr.mxu0 0.0
        %1432 = vmatpush1.msra.mxu0 0.0
        %1433 = vmatprep.subr.mxu0 0.0
        %1434 = vmatpush1.msra.mxu0 0.0
        %1435 = vmatprep.subr.mxu0 0.0
        %1436 = vmatpush1.msra.mxu0 0.0
        %1437 = vmatprep.subr.mxu0 0.0
        %1438 = vmatpush1.msra.mxu0 0.0
        %1439 = vmatprep.subr.mxu0 0.0
        %1440 = vmatpush1.msra.mxu0 0.0
        %1441 = vmatprep.subr.mxu0 0.0
        %1442 = vmatpush1.msra.mxu0 0.0
        %1443 = vmatprep.subr.mxu0 0.0
        %1444 = vmatpush1.msra.mxu0 0.0
        %1445 = vmatprep.subr.mxu0 0.0
        %1446 = vmatpush1.msra.mxu0 0.0
        %1447 = vmatprep.subr.mxu0 0.0
        %1448 = vmatpush1.msra.mxu0 0.0
        %1449 = vmatprep.subr.mxu0 0.0
        %1450 = vmatpush1.msra.mxu0 0.0
        %1451 = vmatprep.subr.mxu0 0.0
        %1452 = vmatpush1.msra.mxu0 0.0
        %1453 = vmatprep.subr.mxu0 0.0
        %1454 = vmatpush1.msra.mxu0 0.0
        %1455 = vmatprep.subr.mxu0 0.0
        %1456 = vmatpush1.msra.mxu0 0.0
        %1457 = vmatprep.subr.mxu0 0.0
        %1458 = vmatpush1.msra.mxu0 0.0
        %1459 = vmatprep.subr.mxu0 0.0
        %1460 = vmatpush1.msra.mxu0 0.0
        %1461 = vmatprep.subr.mxu0 0.0
        %1462 = vmatpush1.msra.mxu0 0.0
        %1463 = vmatprep.subr.mxu0 0.0
        %1464 = vmatpush1.msra.mxu0 0.0
        %1465 = vmatprep.subr.mxu0 0.0
        %1466 = vmatpush1.msra.mxu0 0.0
        %1467 = vmatprep.subr.mxu0 0.0
        %1468 = vmatpush1.msra.mxu0 0.0
        %1469 = vmatprep.subr.mxu0 0.0
        %1470 = vmatpush1.msra.mxu0 0.0
        %1471 = vmatprep.subr.mxu0 0.0
        %1472 = vmatpush1.msra.mxu0 0.0
        %1473 = vmatprep.subr.mxu0 0.0
        %1474 = vmatpush1.msra.mxu0 0.0
        %1475 = vmatprep.subr.mxu0 0.0
        %1476 = vmatpush1.msra.mxu0 0.0
        %1477 = vmatprep.subr.mxu0 0.0
        %1478 = vmatpush1.msra.mxu0 0.0
        %1479 = vmatprep.subr.mxu0 0.0
        %1480 = vmatpush1.msra.mxu0 0.0
        %1481 = vmatprep.mubr.f32.mxu0 0.0
        %1482 = vmatmul.mubr.f32.gmra.mrb[0].mxu0 %v1412
        %v1483 = vpop.f32.mrb[0].mxu0
        %v1484 = vadd.f32 0.0, %v1483
        %v1485 = vpop.f32.mrb[0].mxu0
        %1486 = vmatprep.mubr.f32.mxu0 0.0
        %1487 = vmatmul.mubr.f32.gmra.mrb[0].mxu0 %v1415
        %v1488 = vpop.f32.mrb[0].mxu0
        %v1489 = vadd.f32 0.0, %v1488
        %v1490 = vpop.f32.mrb[0].mxu0
        %1491 = vdwg.mxu0
        %v1492 = vmul.f32 %v397, %v1484
        %v1493 = vmul.f32 %v400, %v1489
        %v1494 = vsel %vm471, %v1492, 0.0
        %v1495 = vsel %vm471, %v1493, 0.0
        %v1496 = vadd.f32 %v1494, %v1495
        %v1497 = vrot.slane %v1496, 4
        %v1498 = vadd.f32 %v1496, %v1497
        %v1499 = vrot.slane %v1498, 2
        %v1500 = vadd.f32 %v1498, %v1499
        %v1501 = vrot.slane %v1500, 1
        %v1502 = vadd.f32 %v1500, %v1501
        %1503 = vst.msk [vmem:[%s218 + $0x5] sm:$0x1] %vm902, %v1502
        %v1504 = vsel %vm778, %v773, -inf
        %v1505 = vsel %vm778, %v774, -inf
        %v1506 = vmax.f32 %v1504, %v1505
        %v1507 = vrot.slane %v1506, 4
        %v1508 = vmax.f32 %v1506, %v1507
        %v1509 = vrot.slane %v1508, 2
        %v1510 = vmax.f32 %v1508, %v1509
        %v1511 = vrot.slane %v1510, 1
        %v1512 = vmax.f32 %v1510, %v1511
        %v1513 = vsub.f32 %v773, %v1512
        %v1514 = vsub.f32 %v774, %v1512
        %v1515 = vmul.f32 %v1513, 1.442695
        %v1516 = vpow.pop %v1515
        %v1517 = vmul.f32 %v1514, 1.442695
        %v1518 = vpow.pop %v1517
        %v1519 = vsel %vm778, %v1516, 0.0
        %v1520 = vsel %vm778, %v1518, 0.0
        %v1521 = vadd.f32 %v1519, %v1520
        %v1522 = vrot.slane %v1521, 4
        %v1523 = vadd.f32 %v1521, %v1522
        %v1524 = vrot.slane %v1523, 2
        %v1525 = vadd.f32 %v1523, %v1524
        %v1526 = vrot.slane %v1525, 1
        %v1527 = vadd.f32 %v1525, %v1526
        %v1528 = vrcp.pop %v1527
        %v1529 = vmul.f32 %v1516, %v1528
        %v1530 = vmul.f32 %v1518, %v1528
        %v1532 = vsel %vm778, %v1529, 0
        %v1535 = vsel %vm778, %v1530, 0
        %1537 = vmatprep.subr.mxu0 0.0
        %1538 = vmatpush1.msra.mxu0 %v814
        %1539 = vmatprep.subr.mxu0 0.0
        %1540 = vmatpush1.msra.mxu0 0.0
        %1541 = vmatprep.subr.mxu0 0.0
        %1542 = vmatpush1.msra.mxu0 0.0
        %1543 = vmatprep.subr.mxu0 0.0
        %1544 = vmatpush1.msra.mxu0 0.0
        %1545 = vmatprep.subr.mxu0 0.0
        %1546 = vmatpush1.msra.mxu0 0.0
        %1547 = vmatprep.subr.mxu0 0.0
        %1548 = vmatpush1.msra.mxu0 0.0
        %1549 = vmatprep.subr.mxu0 0.0
        %1550 = vmatpush1.msra.mxu0 0.0
        %1551 = vmatprep.subr.mxu0 0.0
        %1552 = vmatpush1.msra.mxu0 0.0
        %1553 = vmatprep.subr.mxu0 0.0
        %1554 = vmatpush1.msra.mxu0 0.0
        %1555 = vmatprep.subr.mxu0 0.0
        %1556 = vmatpush1.msra.mxu0 0.0
        %1557 = vmatprep.subr.mxu0 0.0
        %1558 = vmatpush1.msra.mxu0 0.0
        %1559 = vmatprep.subr.mxu0 0.0
        %1560 = vmatpush1.msra.mxu0 0.0
        %1561 = vmatprep.subr.mxu0 0.0
        %1562 = vmatpush1.msra.mxu0 0.0
        %1563 = vmatprep.subr.mxu0 0.0
        %1564 = vmatpush1.msra.mxu0 0.0
        %1565 = vmatprep.subr.mxu0 0.0
        %1566 = vmatpush1.msra.mxu0 0.0
        %1567 = vmatprep.subr.mxu0 0.0
        %1568 = vmatpush1.msra.mxu0 0.0
        %1569 = vmatprep.subr.mxu0 0.0
        %1570 = vmatpush1.msra.mxu0 0.0
        %1571 = vmatprep.subr.mxu0 0.0
        %1572 = vmatpush1.msra.mxu0 0.0
        %1573 = vmatprep.subr.mxu0 0.0
        %1574 = vmatpush1.msra.mxu0 0.0
        %1575 = vmatprep.subr.mxu0 0.0
        %1576 = vmatpush1.msra.mxu0 0.0
        %1577 = vmatprep.subr.mxu0 0.0
        %1578 = vmatpush1.msra.mxu0 0.0
        %1579 = vmatprep.subr.mxu0 0.0
        %1580 = vmatpush1.msra.mxu0 0.0
        %1581 = vmatprep.subr.mxu0 0.0
        %1582 = vmatpush1.msra.mxu0 0.0
        %1583 = vmatprep.subr.mxu0 0.0
        %1584 = vmatpush1.msra.mxu0 0.0
        %1585 = vmatprep.subr.mxu0 0.0
        %1586 = vmatpush1.msra.mxu0 0.0
        %1587 = vmatprep.subr.mxu0 0.0
        %1588 = vmatpush1.msra.mxu0 0.0
        %1589 = vmatprep.subr.mxu0 0.0
        %1590 = vmatpush1.msra.mxu0 0.0
        %1591 = vmatprep.subr.mxu0 0.0
        %1592 = vmatpush1.msra.mxu0 0.0
        %1593 = vmatprep.subr.mxu0 0.0
        %1594 = vmatpush1.msra.mxu0 0.0
        %1595 = vmatprep.subr.mxu0 0.0
        %1596 = vmatpush1.msra.mxu0 0.0
        %1597 = vmatprep.subr.mxu0 0.0
        %1598 = vmatpush1.msra.mxu0 0.0
        %1599 = vmatprep.subr.mxu0 0.0
        %1600 = vmatpush1.msra.mxu0 0.0
        %1601 = vmatprep.mubr.f32.mxu0 0.0
        %1602 = vmatmul.mubr.f32.gmra.mrb[0].mxu0 %v1532
        %v1603 = vpop.f32.mrb[0].mxu0
        %v1604 = vadd.f32 0.0, %v1603
        %v1605 = vpop.f32.mrb[0].mxu0
        %1606 = vmatprep.mubr.f32.mxu0 0.0
        %1607 = vmatmul.mubr.f32.gmra.mrb[0].mxu0 %v1535
        %v1608 = vpop.f32.mrb[0].mxu0
        %v1609 = vadd.f32 0.0, %v1608
        %v1610 = vpop.f32.mrb[0].mxu0
        %1611 = vdwg.mxu0
        %v1612 = vmul.f32 %v405, %v1604
        %v1613 = vmul.f32 %v408, %v1609
        %v1614 = vsel %vm471, %v1612, 0.0
        %v1615 = vsel %vm471, %v1613, 0.0
        %v1616 = vadd.f32 %v1614, %v1615
        %v1617 = vrot.slane %v1616, 4
        %v1618 = vadd.f32 %v1616, %v1617
        %v1619 = vrot.slane %v1618, 2
        %v1620 = vadd.f32 %v1618, %v1619
        %v1621 = vrot.slane %v1620, 1
        %v1622 = vadd.f32 %v1620, %v1621
        %1623 = vst.msk [vmem:[%s218 + $0x6] sm:$0x1] %vm902, %v1622
        %v1624 = vsel %vm778, %v775, -inf
        %v1625 = vsel %vm778, %v776, -inf
        %v1626 = vmax.f32 %v1624, %v1625
        %v1627 = vrot.slane %v1626, 4
        %v1628 = vmax.f32 %v1626, %v1627
        %v1629 = vrot.slane %v1628, 2
        %v1630 = vmax.f32 %v1628, %v1629
        %v1631 = vrot.slane %v1630, 1
        %v1632 = vmax.f32 %v1630, %v1631
        %v1633 = vsub.f32 %v775, %v1632
        %v1634 = vsub.f32 %v776, %v1632
        %v1635 = vmul.f32 %v1633, 1.442695
        %v1636 = vpow.pop %v1635
        %v1637 = vmul.f32 %v1634, 1.442695
        %v1638 = vpow.pop %v1637
        %v1639 = vsel %vm778, %v1636, 0.0
        %v1640 = vsel %vm778, %v1638, 0.0
        %v1641 = vadd.f32 %v1639, %v1640
        %v1642 = vrot.slane %v1641, 4
        %v1643 = vadd.f32 %v1641, %v1642
        %v1644 = vrot.slane %v1643, 2
        %v1645 = vadd.f32 %v1643, %v1644
        %v1646 = vrot.slane %v1645, 1
        %v1647 = vadd.f32 %v1645, %v1646
        %v1648 = vrcp.pop %v1647
        %v1649 = vmul.f32 %v1636, %v1648
        %v1650 = vmul.f32 %v1638, %v1648
        %v1652 = vsel %vm778, %v1649, 0
        %v1655 = vsel %vm778, %v1650, 0
        %1657 = vmatprep.subr.mxu0 0.0
        %1658 = vmatpush1.msra.mxu0 %v814
        %1659 = vmatprep.subr.mxu0 0.0
        %1660 = vmatpush1.msra.mxu0 0.0
        %1661 = vmatprep.subr.mxu0 0.0
        %1662 = vmatpush1.msra.mxu0 0.0
        %1663 = vmatprep.subr.mxu0 0.0
        %1664 = vmatpush1.msra.mxu0 0.0
        %1665 = vmatprep.subr.mxu0 0.0
        %1666 = vmatpush1.msra.mxu0 0.0
        %1667 = vmatprep.subr.mxu0 0.0
        %1668 = vmatpush1.msra.mxu0 0.0
        %1669 = vmatprep.subr.mxu0 0.0
        %1670 = vmatpush1.msra.mxu0 0.0
        %1671 = vmatprep.subr.mxu0 0.0
        %1672 = vmatpush1.msra.mxu0 0.0
        %1673 = vmatprep.subr.mxu0 0.0
        %1674 = vmatpush1.msra.mxu0 0.0
        %1675 = vmatprep.subr.mxu0 0.0
        %1676 = vmatpush1.msra.mxu0 0.0
        %1677 = vmatprep.subr.mxu0 0.0
        %1678 = vmatpush1.msra.mxu0 0.0
        %1679 = vmatprep.subr.mxu0 0.0
        %1680 = vmatpush1.msra.mxu0 0.0
        %1681 = vmatprep.subr.mxu0 0.0
        %1682 = vmatpush1.msra.mxu0 0.0
        %1683 = vmatprep.subr.mxu0 0.0
        %1684 = vmatpush1.msra.mxu0 0.0
        %1685 = vmatprep.subr.mxu0 0.0
        %1686 = vmatpush1.msra.mxu0 0.0
        %1687 = vmatprep.subr.mxu0 0.0
        %1688 = vmatpush1.msra.mxu0 0.0
        %1689 = vmatprep.subr.mxu0 0.0
        %1690 = vmatpush1.msra.mxu0 0.0
        %1691 = vmatprep.subr.mxu0 0.0
        %1692 = vmatpush1.msra.mxu0 0.0
        %1693 = vmatprep.subr.mxu0 0.0
        %1694 = vmatpush1.msra.mxu0 0.0
        %1695 = vmatprep.subr.mxu0 0.0
        %1696 = vmatpush1.msra.mxu0 0.0
        %1697 = vmatprep.subr.mxu0 0.0
        %1698 = vmatpush1.msra.mxu0 0.0
        %1699 = vmatprep.subr.mxu0 0.0
        %1700 = vmatpush1.msra.mxu0 0.0
        %1701 = vmatprep.subr.mxu0 0.0
        %1702 = vmatpush1.msra.mxu0 0.0
        %1703 = vmatprep.subr.mxu0 0.0
        %1704 = vmatpush1.msra.mxu0 0.0
        %1705 = vmatprep.subr.mxu0 0.0
        %1706 = vmatpush1.msra.mxu0 0.0
        %1707 = vmatprep.subr.mxu0 0.0
        %1708 = vmatpush1.msra.mxu0 0.0
        %1709 = vmatprep.subr.mxu0 0.0
        %1710 = vmatpush1.msra.mxu0 0.0
        %1711 = vmatprep.subr.mxu0 0.0
        %1712 = vmatpush1.msra.mxu0 0.0
        %1713 = vmatprep.subr.mxu0 0.0
        %1714 = vmatpush1.msra.mxu0 0.0
        %1715 = vmatprep.subr.mxu0 0.0
        %1716 = vmatpush1.msra.mxu0 0.0
        %1717 = vmatprep.subr.mxu0 0.0
        %1718 = vmatpush1.msra.mxu0 0.0
        %1719 = vmatprep.subr.mxu0 0.0
        %1720 = vmatpush1.msra.mxu0 0.0
        %1721 = vmatprep.mubr.f32.mxu0 0.0
        %1722 = vmatmul.mubr.f32.gmra.mrb[0].mxu0 %v1652
        %v1723 = vpop.f32.mrb[0].mxu0
        %v1724 = vadd.f32 0.0, %v1723
        %v1725 = vpop.f32.mrb[0].mxu0
        %1726 = vmatprep.mubr.f32.mxu0 0.0
        %1727 = vmatmul.mubr.f32.gmra.mrb[0].mxu0 %v1655
        %v1728 = vpop.f32.mrb[0].mxu0
        %v1729 = vadd.f32 0.0, %v1728
        %v1730 = vpop.f32.mrb[0].mxu0
        %1731 = vdwg.mxu0
        %v1732 = vmul.f32 %v413, %v1724
        %v1733 = vmul.f32 %v416, %v1729
        %v1734 = vsel %vm471, %v1732, 0.0
        %v1735 = vsel %vm471, %v1733, 0.0
        %v1736 = vadd.f32 %v1734, %v1735
        %v1737 = vrot.slane %v1736, 4
        %v1738 = vadd.f32 %v1736, %v1737
        %v1739 = vrot.slane %v1738, 2
        %v1740 = vadd.f32 %v1738, %v1739
        %v1741 = vrot.slane %v1740, 1
        %v1742 = vadd.f32 %v1740, %v1741
        %1743 = vst.msk [vmem:[%s218 + $0x7] sm:$0x1] %vm902, %v1742
        %s1744 = sand.u32 %s137, 1
        %s1745 = scalar_lea.sflag [#allocation3], %s1744
        %s1746 = sand.u32 %s137, 1
        %s1747 = smul.addr %s1746, 8
        %s1748 = scalar_lea.vmem [#allocation2], %s1747
        // Predicated region
        $region41: #{tpu_custom_call.1} parent=39 // pred_check
          %p1749 = pneg %p147
        $region42: #{tpu_custom_call.1} parent=39 // pred_check_branch
          %1751 = sbr.rel (%p1749) target = $region44
        $region43: #{tpu_custom_call.1} parent=39 // pred_region
          %s1753 = ssub.s32 128, 128
          %1754 = vsyncadd %s1745, %s1753
          %s1755 = smul.addr %s19, 128
          %s1756 = scalar_lea.hbm %s5, %s1755
          %s1758 = sshll.u32 %s1748, 4
          %s1759 = int_to_ptr.vmem [resolvable:$true] %s1758
          %1761 = dma.vmem_to_hbm [thread:$0]  %s1759, 128, %s1756, %s1745
        $region44: #{tpu_custom_call.1} parent=39 // pred_fallthru
          _
      $region40: #{tpu_custom_call.1} parent=5 // pred_fallthru
        _
      %p1762 = scmp.le.s32.totalorder 2, %s14
      // Predicated region
      $region45: #{tpu_custom_call.1} parent=5 // pred_check
        %p1763 = pneg %p1762
      $region46: #{tpu_custom_call.1} parent=5 // pred_check_branch
        %1765 = sbr.rel (%p1763) target = $region48
      $region47: #{tpu_custom_call.1} parent=5 // pred_region
        %s1766 = ssub.s32 %s14, 2
        // Predicated region
        $region49: #{tpu_custom_call.1} parent=47 // pred_check
          %p1767 = pneg %p153
        $region50: #{tpu_custom_call.1} parent=47 // pred_check_branch
          %1769 = sbr.rel (%p1767) target = $region52
        $region51: #{tpu_custom_call.1} parent=47 // pred_region
          %s1770 = sand.u32 %s138, 1
          %s1771 = scalar_lea.sflag [#allocation3], %s1770
          %s1772 = sand.u32 %s138, 1
          %s1773 = smul.addr %s1772, 8
          %s1774 = scalar_lea.vmem [#allocation2], %s1773
          %1775 = dma.done %s1771, 128
        $region52: #{tpu_custom_call.1} parent=47 // pred_fallthru
          _
      $region48: #{tpu_custom_call.1} parent=5 // pred_fallthru
        _
    $region6: #{tpu_custom_call.1} parent=1 // loop_footer
      %s18 = sadd.s32 1, %s14
    $region7: #{tpu_custom_call.1} parent=1 // loop_footer_branch
      %13 = sbr.rel target = $region3
    $region8: #{tpu_custom_call.1} parent=1 // loop_exit
      _
    %1776 = vsyncpa [#allocation3], 1
    %s1777 = scalar_lea.sflag [#allocation3], 1
    %1778 = vsyncpa %s1777, 1

</llo_original>
